<compile_context>
chip_gen: v7x
topology: tpu7x:2x2x1
jax: 0.10.0
libtpu: 0.0.40
codegen_flags: <defaults>
</compile_context>

<pallas_src>
import math
import jax
import jax.numpy as jnp
from jax import lax
from jax.experimental import pallas as pl
from jax.experimental.pallas import tpu as pltpu

N_EMBD = 32
N_HEAD = 4
HEAD_DIM = N_EMBD // N_HEAD
LN_EPS = 1e-5


def _layernorm(x, w, b):
    # x: (M, C); w, b: (1, C). Biased variance, eps=1e-5, like nn.LayerNorm.
    mean = jnp.mean(x, axis=-1, keepdims=True)
    xc = x - mean
    var = jnp.mean(xc * xc, axis=-1, keepdims=True)
    return xc * lax.rsqrt(var + LN_EPS) * w + b


def _gelu_exact(x):
    # nn.GELU() default = exact erf formulation
    return 0.5 * x * (1.0 + lax.erf(x * (1.0 / math.sqrt(2.0))))


def block_kernel(x_ref,
                 ln1_w_ref, ln1_b_ref,
                 wqkv_ref, bqkv_ref,
                 wp_ref, bp_ref,
                 ln2_w_ref, ln2_b_ref,
                 w1_ref, b1_ref, w2_ref, b2_ref,
                 o_ref):
    B, T, C = x_ref.shape
    H, Dh = N_HEAD, HEAD_DIM
    mm_dtype = wqkv_ref.dtype                      # bf16 MXU weight operands

    # Flatten batch into the matmul M dimension (safe leading-dim reshape).
    x2 = x_ref[...].reshape(B * T, C)              # (B*T, C) f32

    # ---- LayerNorm 1 (f32) ----
    h1 = _layernorm(x2, ln1_w_ref[...], ln1_b_ref[...])

    # ---- fused QKV projection: one (B*T, C) x (C, 3C) matmul ----
    # Columns are head-major ([q_h|k_h|v_h] per head) and the Q columns already carry
    # the 1/sqrt(Dh) attention scale (folded at pack time).
    qkv = jnp.dot(h1.astype(mm_dtype), wqkv_ref[...],
                  preferred_element_type=jnp.float32) + bqkv_ref[...]   # (B*T, 3C) f32

    # ---- Multi-head self attention (no mask, matches the reference module) ----
    y_heads = []
    for h in range(H):                             # small static head count -> unrolled
        chunk = qkv[:, h * 3 * Dh:(h + 1) * 3 * Dh]       # one 3*Dh-lane slice per head
        qh = chunk[:, 0 * Dh:1 * Dh].reshape(B, T, Dh)    # pre-scaled Q
        kh = chunk[:, 1 * Dh:2 * Dh].reshape(B, T, Dh)
        vh = chunk[:, 2 * Dh:3 * Dh].reshape(B, T, Dh)

        s = jnp.einsum('btd,bsd->bts', qh, kh,
                       preferred_element_type=jnp.float32)              # (B, T, T) f32
        m = jnp.max(s, axis=-1, keepdims=True)
        e = jnp.exp(s - m)
        p = e * pl.reciprocal(jnp.sum(e, axis=-1, keepdims=True), approx=True)
        # TODO(synk): attention-prob dropout skipped (inference / eval mode)

        yh = jnp.einsum('bts,bsd->btd', p, vh,
                        preferred_element_type=jnp.float32)             # (B, T, Dh)
        y_heads.append(yh.reshape(B * T, Dh))

    # Assemble all heads (head-major, matching the original proj weight layout) and do
    # one (B*T, C) x (C, C) output projection instead of 4 tiny per-head matmuls.
    y_all = jnp.concatenate(y_heads, axis=-1)                           # (B*T, C)
    attn_out = jnp.dot(y_all.astype(mm_dtype), wp_ref[...],
                       preferred_element_type=jnp.float32)

    x1 = x2 + attn_out + bp_ref[...]

    # ---- LayerNorm 2 + FeedForward ----
    h2 = _layernorm(x1, ln2_w_ref[...], ln2_b_ref[...])
    f = jnp.dot(h2.astype(mm_dtype), w1_ref[...],
                preferred_element_type=jnp.float32) + b1_ref[...]
    f = _gelu_exact(f)
    f = jnp.dot(f.astype(mm_dtype), w2_ref[...],
                preferred_element_type=jnp.float32) + b2_ref[...]
    # TODO(synk): FeedForward dropout skipped (inference / eval mode)

    o_ref[...] = (x1 + f).reshape(B, T, C).astype(o_ref.dtype)


def _cost_estimate(B, T, C, H):
    Dh = C // H
    flops = 2 * B * T * C * (3 * C)              # QKV projection
    flops += 2 * B * H * T * T * Dh * 2          # QK^T + PV
    flops += 2 * B * T * C * C                   # output projection
    flops += 2 * B * T * C * (4 * C) * 2         # FFN
    transcendentals = B * H * T * T + B * T * 4 * C + 2 * B * T   # exp, erf, rsqrt
    bytes_accessed = (2 * B * T * C * 4                       # x in + out (f32)
                      + (3 * C * C + C * C + 8 * C * C) * 2   # bf16 weights
                      + (3 * C + C + 4 * C + C + 4 * C) * 4)  # f32 biases / ln params
    return pl.CostEstimate(flops=flops, transcendentals=transcendentals,
                           bytes_accessed=bytes_accessed)


def block_forward(x, packed_params):
    B, T, C = x.shape
    # Single kernel invocation, no grid: the whole problem (~65 KFLOP, tens of KiB of
    # operands) fits VMEM with huge margin, so a grid would only add per-step overhead
    # (a serial loop on single-TC v5e/v6e; not worth a cross-core split on v7x).
    # Each ref is the full array, staged in VMEM exactly once, no double-buffering.
    vmem = pl.BlockSpec(memory_space=pltpu.MemorySpace.VMEM)
    return pl.pallas_call(
        block_kernel,
        out_shape=jax.ShapeDtypeStruct((B, T, C), x.dtype),
        in_specs=[vmem] * (1 + len(packed_params)),
        out_specs=vmem,
        cost_estimate=_cost_estimate(B, T, C, N_HEAD),
    )(x, *packed_params)


# ----------------------------------------------------------------------------- params
def init_raw_params(key, n_embd):
    ks = jax.random.split(key, 8)

    def lin(k, din, dout):
        return (0.02 * jax.random.normal(k, (din, dout), jnp.float32),
                jnp.zeros((dout,), jnp.float32))

    ln1_w, ln1_b = jnp.ones((n_embd,), jnp.float32), jnp.zeros((n_embd,), jnp.float32)
    ln2_w, ln2_b = jnp.ones((n_embd,), jnp.float32), jnp.zeros((n_embd,), jnp.float32)
    wq, bq = lin(ks[0], n_embd, n_embd)
    wk, bk = lin(ks[1], n_embd, n_embd)
    wv, bv = lin(ks[2], n_embd, n_embd)
    wp, bp = lin(ks[3], n_embd, n_embd)
    w1, b1 = lin(ks[4], n_embd, 4 * n_embd)
    w2, b2 = lin(ks[5], 4 * n_embd, n_embd)
    return (ln1_w, ln1_b, wq, bq, wk, bk, wv, bv, wp, bp,
            ln2_w, ln2_b, w1, b1, w2, b2)


def pack_params(raw, mm_dtype=jnp.bfloat16):
    (ln1_w, ln1_b, wq, bq, wk, bk, wv, bv, wp, bp,
     ln2_w, ln2_b, w1, b1, w2, b2) = raw
    C = ln1_w.shape[0]
    H, Dh = N_HEAD, HEAD_DIM
    scale = 1.0 / math.sqrt(Dh)

    # Fold the attention scale into the Q projection (weight + bias) offline.
    wq_s, bq_s = wq * scale, bq * scale

    # Head-major QKV column layout: per head h the 3*Dh columns are [q_h | k_h | v_h].
    def wheads(w):   # (C, C) -> (C, H, Dh)
        return w.reshape(C, H, Dh)

    def bheads(b):   # (C,) -> (H, Dh)
        return b.reshape(H, Dh)

    wqkv = jnp.concatenate([wheads(wq_s), wheads(wk), wheads(wv)], axis=2)  # (C, H, 3Dh)
    wqkv = wqkv.reshape(C, 3 * C).astype(mm_dtype)
    bqkv = jnp.concatenate([bheads(bq_s), bheads(bk), bheads(bv)], axis=1)  # (H, 3Dh)
    bqkv = bqkv.reshape(1, 3 * C)                                           # f32

    return (ln1_w.reshape(1, C), ln1_b.reshape(1, C),
            wqkv, bqkv,
            wp.astype(mm_dtype), bp.reshape(1, C),
            ln2_w.reshape(1, C), ln2_b.reshape(1, C),
            w1.astype(mm_dtype), b1.reshape(1, 4 * C),
            w2.astype(mm_dtype), b2.reshape(1, C))


# ----------------------------------------------------------------------------- reference
def block_reference(x, raw):
    (ln1_w, ln1_b, wq, bq, wk, bk, wv, bv, wp, bp,
     ln2_w, ln2_b, w1, b1, w2, b2) = raw
    B, T, C = x.shape
    H, Dh = N_HEAD, HEAD_DIM

    def ln(z, w, b):
        m = jnp.mean(z, -1, keepdims=True)
        v = jnp.mean((z - m) ** 2, -1, keepdims=True)
        return (z - m) * lax.rsqrt(v + LN_EPS) * w + b

    h1 = ln(x, ln1_w, ln1_b)
    q = (h1 @ wq + bq).reshape(B, T, H, Dh).transpose(0, 2, 1, 3)
    k = (h1 @ wk + bk).reshape(B, T, H, Dh).transpose(0, 2, 1, 3)
    v = (h1 @ wv + bv).reshape(B, T, H, Dh).transpose(0, 2, 1, 3)
    att = jnp.einsum('bhtd,bhsd->bhts', q, k) / math.sqrt(Dh)
    att = jax.nn.softmax(att, axis=-1)
    y = jnp.einsum('bhts,bhsd->bhtd', att, v).transpose(0, 2, 1, 3).reshape(B, T, C)
    x1 = x + y @ wp + bp
    h2 = ln(x1, ln2_w, ln2_b)
    f = jax.nn.gelu(h2 @ w1 + b1, approximate=False) @ w2 + b2
    return x1 + f


if __name__ == "__main__":
    key = jax.random.PRNGKey(0)
    kx, kp = jax.random.split(key)
    B, T = 2, 8
    x = jax.random.normal(kx, (B, T, N_EMBD), jnp.float32)
    raw = init_raw_params(kp, N_EMBD)
    packed = pack_params(raw)

    out = block_forward(x, packed)
    out = jax.block_until_ready(out)

    assert out.shape == (B, T, N_EMBD)
    assert jnp.all(jnp.isfinite(out))
    ref = block_reference(x, raw)
    max_err = float(jnp.max(jnp.abs(out - ref)))
    assert max_err < 2e-2, f"max abs err {max_err}"
    print("KERNEL_OK")
</pallas_src>

<mosaic_0001>
module attributes {stable_mosaic.version = 11 : i64} {
  func.func @block_kernel(%arg0: memref<2x8x32xf32, #tpu.memory_space<vmem>>, %arg1: memref<1x32xf32, #tpu.memory_space<vmem>>, %arg2: memref<1x32xf32, #tpu.memory_space<vmem>>, %arg3: memref<32x96xbf16, #tpu.memory_space<vmem>>, %arg4: memref<1x96xf32, #tpu.memory_space<vmem>>, %arg5: memref<32x32xbf16, #tpu.memory_space<vmem>>, %arg6: memref<1x32xf32, #tpu.memory_space<vmem>>, %arg7: memref<1x32xf32, #tpu.memory_space<vmem>>, %arg8: memref<1x32xf32, #tpu.memory_space<vmem>>, %arg9: memref<32x128xbf16, #tpu.memory_space<vmem>>, %arg10: memref<1x128xf32, #tpu.memory_space<vmem>>, %arg11: memref<128x32xbf16, #tpu.memory_space<vmem>>, %arg12: memref<1x32xf32, #tpu.memory_space<vmem>>, %arg13: memref<2x8x32xf32, #tpu.memory_space<vmem>>) attributes {dimension_semantics = [], scalar_prefetch = 0 : i64, scratch_operands = 0 : i64, tpu.core_type = #tpu.core_type<tc>} {
    %c0 = arith.constant 0 : index
    %c0_0 = arith.constant 0 : index
    %c0_1 = arith.constant 0 : index
    %0 = vector.load %arg0[%c0, %c0_0, %c0_1] : memref<2x8x32xf32, #tpu.memory_space<vmem>>, vector<2x8x32xf32>
    %1 = vector.shape_cast %0 : vector<2x8x32xf32> to vector<16x32xf32>
    %c0_2 = arith.constant 0 : index
    %c0_3 = arith.constant 0 : index
    %2 = vector.load %arg1[%c0_2, %c0_3] : memref<1x32xf32, #tpu.memory_space<vmem>>, vector<1x32xf32>
    %c0_4 = arith.constant 0 : index
    %c0_5 = arith.constant 0 : index
    %3 = vector.load %arg2[%c0_4, %c0_5] : memref<1x32xf32, #tpu.memory_space<vmem>>, vector<1x32xf32>
    %cst = arith.constant dense<0.000000e+00> : vector<16xf32>
    %4 = vector.multi_reduction <add>, %1, %cst [1] : vector<16x32xf32> to vector<16xf32>
    %5 = vector.shape_cast %4 : vector<16xf32> to vector<16x1xf32>
    %cst_6 = arith.constant 3.200000e+01 : f32
    %6 = vector.broadcast %cst_6 : f32 to vector<16x1xf32>
    %7 = arith.divf %5, %6 : vector<16x1xf32>
    %8 = vector.broadcast %7 : vector<16x1xf32> to vector<16x32xf32>
    %9 = arith.subf %1, %8 : vector<16x32xf32>
    %10 = arith.mulf %9, %9 : vector<16x32xf32>
    %cst_7 = arith.constant dense<0.000000e+00> : vector<16xf32>
    %11 = vector.multi_reduction <add>, %10, %cst_7 [1] : vector<16x32xf32> to vector<16xf32>
    %12 = vector.shape_cast %11 : vector<16xf32> to vector<16x1xf32>
    %cst_8 = arith.constant 3.200000e+01 : f32
    %13 = vector.broadcast %cst_8 : f32 to vector<16x1xf32>
    %14 = arith.divf %12, %13 : vector<16x1xf32>
    %cst_9 = arith.constant 9.99999974E-6 : f32
    %15 = vector.broadcast %cst_9 : f32 to vector<16x1xf32>
    %16 = arith.addf %14, %15 : vector<16x1xf32>
    %17 = math.rsqrt %16 : vector<16x1xf32>
    %18 = vector.broadcast %17 : vector<16x1xf32> to vector<16x32xf32>
    %19 = arith.mulf %9, %18 : vector<16x32xf32>
    %20 = vector.broadcast %2 : vector<1x32xf32> to vector<16x32xf32>
    %21 = arith.mulf %19, %20 : vector<16x32xf32>
    %22 = vector.broadcast %3 : vector<1x32xf32> to vector<16x32xf32>
    %23 = arith.addf %21, %22 : vector<16x32xf32>
    %24 = arith.truncf %23 : vector<16x32xf32> to vector<16x32xbf16>
    %c0_10 = arith.constant 0 : index
    %c0_11 = arith.constant 0 : index
    %25 = vector.load %arg3[%c0_10, %c0_11] : memref<32x96xbf16, #tpu.memory_space<vmem>>, vector<32x96xbf16>
    %cst_12 = arith.constant dense<0.000000e+00> : vector<16x96xf32>
    %26 = tpu.matmul %24, %25, %cst_12 {dimension_numbers = #tpu.dot_dimension_numbers<[1], [0], [0], [1], [0, 0, 1, 1], [], []>} : vector<16x32xbf16>, vector<32x96xbf16>, vector<16x96xf32> -> vector<16x96xf32>
    %c0_13 = arith.constant 0 : index
    %c0_14 = arith.constant 0 : index
    %27 = vector.load %arg4[%c0_13, %c0_14] : memref<1x96xf32, #tpu.memory_space<vmem>>, vector<1x96xf32>
    %28 = vector.broadcast %27 : vector<1x96xf32> to vector<16x96xf32>
    %29 = arith.addf %26, %28 : vector<16x96xf32>
    %30 = vector.extract_strided_slice %29 {offsets = [0, 0], sizes = [16, 24], strides = [1, 1]} : vector<16x96xf32> to vector<16x24xf32>
    %31 = vector.extract_strided_slice %30 {offsets = [0, 0], sizes = [16, 8], strides = [1, 1]} : vector<16x24xf32> to vector<16x8xf32>
    %32 = vector.shape_cast %31 : vector<16x8xf32> to vector<2x8x8xf32>
    %33 = vector.extract_strided_slice %30 {offsets = [0, 8], sizes = [16, 8], strides = [1, 1]} : vector<16x24xf32> to vector<16x8xf32>
    %34 = vector.shape_cast %33 : vector<16x8xf32> to vector<2x8x8xf32>
    %35 = vector.extract_strided_slice %30 {offsets = [0, 16], sizes = [16, 8], strides = [1, 1]} : vector<16x24xf32> to vector<16x8xf32>
    %36 = vector.shape_cast %35 : vector<16x8xf32> to vector<2x8x8xf32>
    "tpu.trace_start"() <{level = 10 : i32, message = "btd,bsd->bts"}> : () -> ()
    %cst_15 = arith.constant dense<0.000000e+00> : vector<2x8x8xf32>
    %37 = tpu.matmul %32, %34, %cst_15 {dimension_numbers = #tpu.dot_dimension_numbers<[2], [2], [1], [1], [0, 0, 0, 1, 1, 1], [0], [0]>} : vector<2x8x8xf32>, vector<2x8x8xf32>, vector<2x8x8xf32> -> vector<2x8x8xf32>
    "tpu.trace_stop"() : () -> ()
    %cst_16 = arith.constant dense<0xFF800000> : vector<2x8xf32>
    %38 = vector.multi_reduction <maximumf>, %37, %cst_16 [2] : vector<2x8x8xf32> to vector<2x8xf32>
    %39 = vector.shape_cast %38 : vector<2x8xf32> to vector<2x8x1xf32>
    %40 = vector.broadcast %39 : vector<2x8x1xf32> to vector<2x8x8xf32>
    %41 = arith.subf %37, %40 : vector<2x8x8xf32>
    %42 = math.exp %41 : vector<2x8x8xf32>
    %cst_17 = arith.constant dense<0.000000e+00> : vector<2x8xf32>
    %43 = vector.multi_reduction <add>, %42, %cst_17 [2] : vector<2x8x8xf32> to vector<2x8xf32>
    %44 = vector.shape_cast %43 : vector<2x8xf32> to vector<2x8x1xf32>
    %45 = tpu.reciprocal %44 {approx = true} : vector<2x8x1xf32> -> vector<2x8x1xf32>
    %46 = vector.broadcast %45 : vector<2x8x1xf32> to vector<2x8x8xf32>
    %47 = arith.mulf %42, %46 : vector<2x8x8xf32>
    "tpu.trace_start"() <{level = 10 : i32, message = "bts,bsd->btd"}> : () -> ()
    %cst_18 = arith.constant dense<0.000000e+00> : vector<2x8x8xf32>
    %48 = tpu.matmul %47, %36, %cst_18 {dimension_numbers = #tpu.dot_dimension_numbers<[2], [1], [1], [2], [0, 0, 0, 1, 1, 2], [0], [0]>} : vector<2x8x8xf32>, vector<2x8x8xf32>, vector<2x8x8xf32> -> vector<2x8x8xf32>
    "tpu.trace_stop"() : () -> ()
    %49 = vector.shape_cast %48 : vector<2x8x8xf32> to vector<16x8xf32>
    %50 = vector.extract_strided_slice %29 {offsets = [0, 24], sizes = [16, 24], strides = [1, 1]} : vector<16x96xf32> to vector<16x24xf32>
    %51 = vector.extract_strided_slice %50 {offsets = [0, 0], sizes = [16, 8], strides = [1, 1]} : vector<16x24xf32> to vector<16x8xf32>
    %52 = vector.shape_cast %51 : vector<16x8xf32> to vector<2x8x8xf32>
    %53 = vector.extract_strided_slice %50 {offsets = [0, 8], sizes = [16, 8], strides = [1, 1]} : vector<16x24xf32> to vector<16x8xf32>
    %54 = vector.shape_cast %53 : vector<16x8xf32> to vector<2x8x8xf32>
    %55 = vector.extract_strided_slice %50 {offsets = [0, 16], sizes = [16, 8], strides = [1, 1]} : vector<16x24xf32> to vector<16x8xf32>
    %56 = vector.shape_cast %55 : vector<16x8xf32> to vector<2x8x8xf32>
    "tpu.trace_start"() <{level = 10 : i32, message = "btd,bsd->bts"}> : () -> ()
    %cst_19 = arith.constant dense<0.000000e+00> : vector<2x8x8xf32>
    %57 = tpu.matmul %52, %54, %cst_19 {dimension_numbers = #tpu.dot_dimension_numbers<[2], [2], [1], [1], [0, 0, 0, 1, 1, 1], [0], [0]>} : vector<2x8x8xf32>, vector<2x8x8xf32>, vector<2x8x8xf32> -> vector<2x8x8xf32>
    "tpu.trace_stop"() : () -> ()
    %cst_20 = arith.constant dense<0xFF800000> : vector<2x8xf32>
    %58 = vector.multi_reduction <maximumf>, %57, %cst_20 [2] : vector<2x8x8xf32> to vector<2x8xf32>
    %59 = vector.shape_cast %58 : vector<2x8xf32> to vector<2x8x1xf32>
    %60 = vector.broadcast %59 : vector<2x8x1xf32> to vector<2x8x8xf32>
    %61 = arith.subf %57, %60 : vector<2x8x8xf32>
    %62 = math.exp %61 : vector<2x8x8xf32>
    %cst_21 = arith.constant dense<0.000000e+00> : vector<2x8xf32>
    %63 = vector.multi_reduction <add>, %62, %cst_21 [2] : vector<2x8x8xf32> to vector<2x8xf32>
    %64 = vector.shape_cast %63 : vector<2x8xf32> to vector<2x8x1xf32>
    %65 = tpu.reciprocal %64 {approx = true} : vector<2x8x1xf32> -> vector<2x8x1xf32>
    %66 = vector.broadcast %65 : vector<2x8x1xf32> to vector<2x8x8xf32>
    %67 = arith.mulf %62, %66 : vector<2x8x8xf32>
    "tpu.trace_start"() <{level = 10 : i32, message = "bts,bsd->btd"}> : () -> ()
    %cst_22 = arith.constant dense<0.000000e+00> : vector<2x8x8xf32>
    %68 = tpu.matmul %67, %56, %cst_22 {dimension_numbers = #tpu.dot_dimension_numbers<[2], [1], [1], [2], [0, 0, 0, 1, 1, 2], [0], [0]>} : vector<2x8x8xf32>, vector<2x8x8xf32>, vector<2x8x8xf32> -> vector<2x8x8xf32>
    "tpu.trace_stop"() : () -> ()
    %69 = vector.shape_cast %68 : vector<2x8x8xf32> to vector<16x8xf32>
    %70 = vector.extract_strided_slice %29 {offsets = [0, 48], sizes = [16, 24], strides = [1, 1]} : vector<16x96xf32> to vector<16x24xf32>
    %71 = vector.extract_strided_slice %70 {offsets = [0, 0], sizes = [16, 8], strides = [1, 1]} : vector<16x24xf32> to vector<16x8xf32>
    %72 = vector.shape_cast %71 : vector<16x8xf32> to vector<2x8x8xf32>
    %73 = vector.extract_strided_slice %70 {offsets = [0, 8], sizes = [16, 8], strides = [1, 1]} : vector<16x24xf32> to vector<16x8xf32>
    %74 = vector.shape_cast %73 : vector<16x8xf32> to vector<2x8x8xf32>
    %75 = vector.extract_strided_slice %70 {offsets = [0, 16], sizes = [16, 8], strides = [1, 1]} : vector<16x24xf32> to vector<16x8xf32>
    %76 = vector.shape_cast %75 : vector<16x8xf32> to vector<2x8x8xf32>
    "tpu.trace_start"() <{level = 10 : i32, message = "btd,bsd->bts"}> : () -> ()
    %cst_23 = arith.constant dense<0.000000e+00> : vector<2x8x8xf32>
    %77 = tpu.matmul %72, %74, %cst_23 {dimension_numbers = #tpu.dot_dimension_numbers<[2], [2], [1], [1], [0, 0, 0, 1, 1, 1], [0], [0]>} : vector<2x8x8xf32>, vector<2x8x8xf32>, vector<2x8x8xf32> -> vector<2x8x8xf32>
    "tpu.trace_stop"() : () -> ()
    %cst_24 = arith.constant dense<0xFF800000> : vector<2x8xf32>
    %78 = vector.multi_reduction <maximumf>, %77, %cst_24 [2] : vector<2x8x8xf32> to vector<2x8xf32>
    %79 = vector.shape_cast %78 : vector<2x8xf32> to vector<2x8x1xf32>
    %80 = vector.broadcast %79 : vector<2x8x1xf32> to vector<2x8x8xf32>
    %81 = arith.subf %77, %80 : vector<2x8x8xf32>
    %82 = math.exp %81 : vector<2x8x8xf32>
    %cst_25 = arith.constant dense<0.000000e+00> : vector<2x8xf32>
    %83 = vector.multi_reduction <add>, %82, %cst_25 [2] : vector<2x8x8xf32> to vector<2x8xf32>
    %84 = vector.shape_cast %83 : vector<2x8xf32> to vector<2x8x1xf32>
    %85 = tpu.reciprocal %84 {approx = true} : vector<2x8x1xf32> -> vector<2x8x1xf32>
    %86 = vector.broadcast %85 : vector<2x8x1xf32> to vector<2x8x8xf32>
    %87 = arith.mulf %82, %86 : vector<2x8x8xf32>
    "tpu.trace_start"() <{level = 10 : i32, message = "bts,bsd->btd"}> : () -> ()
    %cst_26 = arith.constant dense<0.000000e+00> : vector<2x8x8xf32>
    %88 = tpu.matmul %87, %76, %cst_26 {dimension_numbers = #tpu.dot_dimension_numbers<[2], [1], [1], [2], [0, 0, 0, 1, 1, 2], [0], [0]>} : vector<2x8x8xf32>, vector<2x8x8xf32>, vector<2x8x8xf32> -> vector<2x8x8xf32>
    "tpu.trace_stop"() : () -> ()
    %89 = vector.shape_cast %88 : vector<2x8x8xf32> to vector<16x8xf32>
    %90 = vector.extract_strided_slice %29 {offsets = [0, 72], sizes = [16, 24], strides = [1, 1]} : vector<16x96xf32> to vector<16x24xf32>
    %91 = vector.extract_strided_slice %90 {offsets = [0, 0], sizes = [16, 8], strides = [1, 1]} : vector<16x24xf32> to vector<16x8xf32>
    %92 = vector.shape_cast %91 : vector<16x8xf32> to vector<2x8x8xf32>
    %93 = vector.extract_strided_slice %90 {offsets = [0, 8], sizes = [16, 8], strides = [1, 1]} : vector<16x24xf32> to vector<16x8xf32>
    %94 = vector.shape_cast %93 : vector<16x8xf32> to vector<2x8x8xf32>
    %95 = vector.extract_strided_slice %90 {offsets = [0, 16], sizes = [16, 8], strides = [1, 1]} : vector<16x24xf32> to vector<16x8xf32>
    %96 = vector.shape_cast %95 : vector<16x8xf32> to vector<2x8x8xf32>
    "tpu.trace_start"() <{level = 10 : i32, message = "btd,bsd->bts"}> : () -> ()
    %cst_27 = arith.constant dense<0.000000e+00> : vector<2x8x8xf32>
    %97 = tpu.matmul %92, %94, %cst_27 {dimension_numbers = #tpu.dot_dimension_numbers<[2], [2], [1], [1], [0, 0, 0, 1, 1, 1], [0], [0]>} : vector<2x8x8xf32>, vector<2x8x8xf32>, vector<2x8x8xf32> -> vector<2x8x8xf32>
    "tpu.trace_stop"() : () -> ()
    %cst_28 = arith.constant dense<0xFF800000> : vector<2x8xf32>
    %98 = vector.multi_reduction <maximumf>, %97, %cst_28 [2] : vector<2x8x8xf32> to vector<2x8xf32>
    %99 = vector.shape_cast %98 : vector<2x8xf32> to vector<2x8x1xf32>
    %100 = vector.broadcast %99 : vector<2x8x1xf32> to vector<2x8x8xf32>
    %101 = arith.subf %97, %100 : vector<2x8x8xf32>
    %102 = math.exp %101 : vector<2x8x8xf32>
    %cst_29 = arith.constant dense<0.000000e+00> : vector<2x8xf32>
    %103 = vector.multi_reduction <add>, %102, %cst_29 [2] : vector<2x8x8xf32> to vector<2x8xf32>
    %104 = vector.shape_cast %103 : vector<2x8xf32> to vector<2x8x1xf32>
    %105 = tpu.reciprocal %104 {approx = true} : vector<2x8x1xf32> -> vector<2x8x1xf32>
    %106 = vector.broadcast %105 : vector<2x8x1xf32> to vector<2x8x8xf32>
    %107 = arith.mulf %102, %106 : vector<2x8x8xf32>
    "tpu.trace_start"() <{level = 10 : i32, message = "bts,bsd->btd"}> : () -> ()
    %cst_30 = arith.constant dense<0.000000e+00> : vector<2x8x8xf32>
    %108 = tpu.matmul %107, %96, %cst_30 {dimension_numbers = #tpu.dot_dimension_numbers<[2], [1], [1], [2], [0, 0, 0, 1, 1, 2], [0], [0]>} : vector<2x8x8xf32>, vector<2x8x8xf32>, vector<2x8x8xf32> -> vector<2x8x8xf32>
    "tpu.trace_stop"() : () -> ()
    %109 = vector.shape_cast %108 : vector<2x8x8xf32> to vector<16x8xf32>
    %110 = tpu.concatenate %49, %69, %89, %109 in 1 : vector<16x8xf32>, vector<16x8xf32>, vector<16x8xf32>, vector<16x8xf32> -> vector<16x32xf32>
    %111 = arith.truncf %110 : vector<16x32xf32> to vector<16x32xbf16>
    %c0_31 = arith.constant 0 : index
    %c0_32 = arith.constant 0 : index
    %112 = vector.load %arg5[%c0_31, %c0_32] : memref<32x32xbf16, #tpu.memory_space<vmem>>, vector<32x32xbf16>
    %cst_33 = arith.constant dense<0.000000e+00> : vector<16x32xf32>
    %113 = tpu.matmul %111, %112, %cst_33 {dimension_numbers = #tpu.dot_dimension_numbers<[1], [0], [0], [1], [0, 0, 1, 1], [], []>} : vector<16x32xbf16>, vector<32x32xbf16>, vector<16x32xf32> -> vector<16x32xf32>
    %114 = arith.addf %1, %113 : vector<16x32xf32>
    %c0_34 = arith.constant 0 : index
    %c0_35 = arith.constant 0 : index
    %115 = vector.load %arg6[%c0_34, %c0_35] : memref<1x32xf32, #tpu.memory_space<vmem>>, vector<1x32xf32>
    %116 = vector.broadcast %115 : vector<1x32xf32> to vector<16x32xf32>
    %117 = arith.addf %114, %116 : vector<16x32xf32>
    %c0_36 = arith.constant 0 : index
    %c0_37 = arith.constant 0 : index
    %118 = vector.load %arg7[%c0_36, %c0_37] : memref<1x32xf32, #tpu.memory_space<vmem>>, vector<1x32xf32>
    %c0_38 = arith.constant 0 : index
    %c0_39 = arith.constant 0 : index
    %119 = vector.load %arg8[%c0_38, %c0_39] : memref<1x32xf32, #tpu.memory_space<vmem>>, vector<1x32xf32>
    %cst_40 = arith.constant dense<0.000000e+00> : vector<16xf32>
    %120 = vector.multi_reduction <add>, %117, %cst_40 [1] : vector<16x32xf32> to vector<16xf32>
    %121 = vector.shape_cast %120 : vector<16xf32> to vector<16x1xf32>
    %cst_41 = arith.constant 3.200000e+01 : f32
    %122 = vector.broadcast %cst_41 : f32 to vector<16x1xf32>
    %123 = arith.divf %121, %122 : vector<16x1xf32>
    %124 = vector.broadcast %123 : vector<16x1xf32> to vector<16x32xf32>
    %125 = arith.subf %117, %124 : vector<16x32xf32>
    %126 = arith.mulf %125, %125 : vector<16x32xf32>
    %cst_42 = arith.constant dense<0.000000e+00> : vector<16xf32>
    %127 = vector.multi_reduction <add>, %126, %cst_42 [1] : vector<16x32xf32> to vector<16xf32>
    %128 = vector.shape_cast %127 : vector<16xf32> to vector<16x1xf32>
    %cst_43 = arith.constant 3.200000e+01 : f32
    %129 = vector.broadcast %cst_43 : f32 to vector<16x1xf32>
    %130 = arith.divf %128, %129 : vector<16x1xf32>
    %cst_44 = arith.constant 9.99999974E-6 : f32
    %131 = vector.broadcast %cst_44 : f32 to vector<16x1xf32>
    %132 = arith.addf %130, %131 : vector<16x1xf32>
    %133 = math.rsqrt %132 : vector<16x1xf32>
    %134 = vector.broadcast %133 : vector<16x1xf32> to vector<16x32xf32>
    %135 = arith.mulf %125, %134 : vector<16x32xf32>
    %136 = vector.broadcast %118 : vector<1x32xf32> to vector<16x32xf32>
    %137 = arith.mulf %135, %136 : vector<16x32xf32>
    %138 = vector.broadcast %119 : vector<1x32xf32> to vector<16x32xf32>
    %139 = arith.addf %137, %138 : vector<16x32xf32>
    %140 = arith.truncf %139 : vector<16x32xf32> to vector<16x32xbf16>
    %c0_45 = arith.constant 0 : index
    %c0_46 = arith.constant 0 : index
    %141 = vector.load %arg9[%c0_45, %c0_46] : memref<32x128xbf16, #tpu.memory_space<vmem>>, vector<32x128xbf16>
    %cst_47 = arith.constant dense<0.000000e+00> : vector<16x128xf32>
    %142 = tpu.matmul %140, %141, %cst_47 {dimension_numbers = #tpu.dot_dimension_numbers<[1], [0], [0], [1], [0, 0, 1, 1], [], []>} : vector<16x32xbf16>, vector<32x128xbf16>, vector<16x128xf32> -> vector<16x128xf32>
    %c0_48 = arith.constant 0 : index
    %c0_49 = arith.constant 0 : index
    %143 = vector.load %arg10[%c0_48, %c0_49] : memref<1x128xf32, #tpu.memory_space<vmem>>, vector<1x128xf32>
    %144 = vector.broadcast %143 : vector<1x128xf32> to vector<16x128xf32>
    %145 = arith.addf %142, %144 : vector<16x128xf32>
    %cst_50 = arith.constant 5.000000e-01 : f32
    %146 = vector.broadcast %cst_50 : f32 to vector<16x128xf32>
    %147 = arith.mulf %146, %145 : vector<16x128xf32>
    %cst_51 = arith.constant 0.707106769 : f32
    %148 = vector.broadcast %cst_51 : f32 to vector<16x128xf32>
    %149 = arith.mulf %145, %148 : vector<16x128xf32>
    %150 = math.erf %149 : vector<16x128xf32>
    %cst_52 = arith.constant 1.000000e+00 : f32
    %151 = vector.broadcast %cst_52 : f32 to vector<16x128xf32>
    %152 = arith.addf %151, %150 : vector<16x128xf32>
    %153 = arith.mulf %147, %152 : vector<16x128xf32>
    %154 = arith.truncf %153 : vector<16x128xf32> to vector<16x128xbf16>
    %c0_53 = arith.constant 0 : index
    %c0_54 = arith.constant 0 : index
    %155 = vector.load %arg11[%c0_53, %c0_54] : memref<128x32xbf16, #tpu.memory_space<vmem>>, vector<128x32xbf16>
    %cst_55 = arith.constant dense<0.000000e+00> : vector<16x32xf32>
    %156 = tpu.matmul %154, %155, %cst_55 {dimension_numbers = #tpu.dot_dimension_numbers<[1], [0], [0], [1], [0, 0, 1, 1], [], []>} : vector<16x128xbf16>, vector<128x32xbf16>, vector<16x32xf32> -> vector<16x32xf32>
    %c0_56 = arith.constant 0 : index
    %c0_57 = arith.constant 0 : index
    %157 = vector.load %arg12[%c0_56, %c0_57] : memref<1x32xf32, #tpu.memory_space<vmem>>, vector<1x32xf32>
    %158 = vector.broadcast %157 : vector<1x32xf32> to vector<16x32xf32>
    %159 = arith.addf %156, %158 : vector<16x32xf32>
    %160 = arith.addf %117, %159 : vector<16x32xf32>
    %161 = vector.shape_cast %160 : vector<16x32xf32> to vector<2x8x32xf32>
    %c0_58 = arith.constant 0 : index
    %c0_59 = arith.constant 0 : index
    %c0_60 = arith.constant 0 : index
    %162 = vector.load %arg13[%c0_58, %c0_59, %c0_60] : memref<2x8x32xf32, #tpu.memory_space<vmem>>, vector<2x8x32xf32>
    tpu.vector_store %arg13[%c0_58, %c0_59, %c0_60], %161 {strides = array<i32>} : memref<2x8x32xf32, #tpu.memory_space<vmem>>, vector<2x8x32xf32>,
    return
  }
}

</mosaic_0001>

<llo_original>
// kernel: tpu_custom_call.1
$region0: #{tpu_custom_call.1}
  #allocation0 [shape = 'u32[]', space=smem, size = 0x4, offset = 0x4, fixed_abs, tag = 'smem constant byte address 0x4 - core index']
  #allocation1 [shape = 'u32[144,128]{1,0:T(1,128)}', space=vmem, size = 0x12000, scoped, tag = 'internal scratch']
  %s0 = inlined_call_operand.vmem [shape: f32[2,8,32], index: 0, kind: input, shape index: {}]
  %s1 = inlined_call_operand.vmem [shape: f32[1,32], index: 1, kind: input, shape index: {}]
  %s2 = inlined_call_operand.vmem [shape: f32[1,32], index: 2, kind: input, shape index: {}]
  %s3 = inlined_call_operand.vmem [shape: bf16[32,96], index: 3, kind: input, shape index: {}]
  %s4 = inlined_call_operand.vmem [shape: f32[1,96], index: 4, kind: input, shape index: {}]
  %s5 = inlined_call_operand.vmem [shape: bf16[32,32], index: 5, kind: input, shape index: {}]
  %s6 = inlined_call_operand.vmem [shape: f32[1,32], index: 6, kind: input, shape index: {}]
  %s7 = inlined_call_operand.vmem [shape: f32[1,32], index: 7, kind: input, shape index: {}]
  %s8 = inlined_call_operand.vmem [shape: f32[1,32], index: 8, kind: input, shape index: {}]
  %s9 = inlined_call_operand.vmem [shape: bf16[32,128], index: 9, kind: input, shape index: {}]
  %s10 = inlined_call_operand.vmem [shape: f32[1,128], index: 10, kind: input, shape index: {}]
  %s11 = inlined_call_operand.vmem [shape: bf16[128,32], index: 11, kind: input, shape index: {}]
  %s12 = inlined_call_operand.vmem [shape: f32[1,32], index: 12, kind: input, shape index: {}]
  %s13 = inlined_call_operand.hbm [shape: f32[2,8,32], index: 13, kind: output, shape index: {}]
  %s14 = sld [smem:[#allocation0]]
  $region62: #{tpu_custom_call.1} parent=0
    _
  %s16 = ssub.s32 1, %s14
  %s17 = scalar_select 0, %s16, %s14
  $region1: #{tpu_custom_call.1} parent=0
    #allocation2 [shape = 'u8[8192]{0}', space=vmem, size = 0x2000, scoped, tag = 'output window, operand 0, single buffered']
    #allocation3 [shape = 's32[1]{0}', space=sflag, size = 0x4, scoped, tag = 'scoped memory for tpu_custom_call.1']
    %18 = vsyncpa [#allocation3], 0
    // Predicated region
    $region2: #{tpu_custom_call.1} parent=1 // pred_check
      _
    $region3: #{tpu_custom_call.1} parent=1 // pred_check_branch
      %20 = sbr.rel (0) target = $region5
    $region4: #{tpu_custom_call.1} parent=1 // pred_region
      _
    $region5: #{tpu_custom_call.1} parent=1 // pred_fallthru
      _
    // Predicated region
    $region6: #{tpu_custom_call.1} parent=1 // pred_check
      _
    $region7: #{tpu_custom_call.1} parent=1 // pred_check_branch
      %22 = sbr.rel (0) target = $region9
    $region8: #{tpu_custom_call.1} parent=1 // pred_region
      _
    $region9: #{tpu_custom_call.1} parent=1 // pred_fallthru
      _
    // Predicated region
    $region10: #{tpu_custom_call.1} parent=1 // pred_check
      _
    $region11: #{tpu_custom_call.1} parent=1 // pred_check_branch
      %24 = sbr.rel (0) target = $region13
    $region12: #{tpu_custom_call.1} parent=1 // pred_region
      _
    $region13: #{tpu_custom_call.1} parent=1 // pred_fallthru
      _
    // Predicated region
    $region14: #{tpu_custom_call.1} parent=1 // pred_check
      _
    $region15: #{tpu_custom_call.1} parent=1 // pred_check_branch
      %26 = sbr.rel (0) target = $region17
    $region16: #{tpu_custom_call.1} parent=1 // pred_region
      _
    $region17: #{tpu_custom_call.1} parent=1 // pred_fallthru
      _
    // Predicated region
    $region18: #{tpu_custom_call.1} parent=1 // pred_check
      _
    $region19: #{tpu_custom_call.1} parent=1 // pred_check_branch
      %28 = sbr.rel (0) target = $region21
    $region20: #{tpu_custom_call.1} parent=1 // pred_region
      _
    $region21: #{tpu_custom_call.1} parent=1 // pred_fallthru
      _
    // Predicated region
    $region22: #{tpu_custom_call.1} parent=1 // pred_check
      _
    $region23: #{tpu_custom_call.1} parent=1 // pred_check_branch
      %30 = sbr.rel (0) target = $region25
    $region24: #{tpu_custom_call.1} parent=1 // pred_region
      _
    $region25: #{tpu_custom_call.1} parent=1 // pred_fallthru
      _
    // Predicated region
    $region26: #{tpu_custom_call.1} parent=1 // pred_check
      _
    $region27: #{tpu_custom_call.1} parent=1 // pred_check_branch
      %32 = sbr.rel (0) target = $region29
    $region28: #{tpu_custom_call.1} parent=1 // pred_region
      _
    $region29: #{tpu_custom_call.1} parent=1 // pred_fallthru
      _
    // Predicated region
    $region30: #{tpu_custom_call.1} parent=1 // pred_check
      _
    $region31: #{tpu_custom_call.1} parent=1 // pred_check_branch
      %34 = sbr.rel (0) target = $region33
    $region32: #{tpu_custom_call.1} parent=1 // pred_region
      _
    $region33: #{tpu_custom_call.1} parent=1 // pred_fallthru
      _
    // Predicated region
    $region34: #{tpu_custom_call.1} parent=1 // pred_check
      _
    $region35: #{tpu_custom_call.1} parent=1 // pred_check_branch
      %36 = sbr.rel (0) target = $region37
    $region36: #{tpu_custom_call.1} parent=1 // pred_region
      _
    $region37: #{tpu_custom_call.1} parent=1 // pred_fallthru
      _
    // Predicated region
    $region38: #{tpu_custom_call.1} parent=1 // pred_check
      _
    $region39: #{tpu_custom_call.1} parent=1 // pred_check_branch
      %38 = sbr.rel (0) target = $region41
    $region40: #{tpu_custom_call.1} parent=1 // pred_region
      _
    $region41: #{tpu_custom_call.1} parent=1 // pred_fallthru
      _
    // Predicated region
    $region42: #{tpu_custom_call.1} parent=1 // pred_check
      _
    $region43: #{tpu_custom_call.1} parent=1 // pred_check_branch
      %40 = sbr.rel (0) target = $region45
    $region44: #{tpu_custom_call.1} parent=1 // pred_region
      _
    $region45: #{tpu_custom_call.1} parent=1 // pred_fallthru
      _
    // Predicated region
    $region46: #{tpu_custom_call.1} parent=1 // pred_check
      _
    $region47: #{tpu_custom_call.1} parent=1 // pred_check_branch
      %42 = sbr.rel (0) target = $region49
    $region48: #{tpu_custom_call.1} parent=1 // pred_region
      _
    $region49: #{tpu_custom_call.1} parent=1 // pred_fallthru
      _
    // Predicated region
    $region50: #{tpu_custom_call.1} parent=1 // pred_check
      _
    $region51: #{tpu_custom_call.1} parent=1 // pred_check_branch
      %44 = sbr.rel (0) target = $region53
    $region52: #{tpu_custom_call.1} parent=1 // pred_region
      _
    $region53: #{tpu_custom_call.1} parent=1 // pred_fallthru
      _
    %v46 = vld [vmem:[%s0] sm:$0xff]
    %v47 = vld [vmem:[%s0 + $0x8] sm:$0xff]
    %v48 = vld [vmem:[%s1] sm:$0x1]
    %v49 = vld [vmem:[%s2] sm:$0x1]
    %vm50 = vcmask 261120
    %v51 = vsel %vm50, %v46, 0.0
    %52 = vadd.xlane.f32.xlu0 %v51
    %v53 = vpop.xlane.xlu0 %52
    %v54 = vsel %vm50, %v47, 0.0
    %55 = vadd.xlane.f32.xlu0 %v54
    %v56 = vpop.xlane.xlu0 %55
    %v57 = vrcp.pop 32.0
    %v58 = vmul.f32 %v53, %v57
    %v59 = vmul.f32 %v56, %v57
    %v60 = vsub.f32 %v46, %v58
    %v61 = vsub.f32 %v47, %v59
    %v62 = vmul.f32 %v60, %v60
    %v63 = vmul.f32 %v61, %v61
    %v64 = vsel %vm50, %v62, 0.0
    %65 = vadd.xlane.f32.xlu0 %v64
    %v66 = vpop.xlane.xlu0 %65
    %v67 = vsel %vm50, %v63, 0.0
    %68 = vadd.xlane.f32.xlu0 %v67
    %v69 = vpop.xlane.xlu0 %68
    %v70 = vmul.f32 %v66, %v57
    %v71 = vmul.f32 %v69, %v57
    %v72 = vadd.f32 %v70, 1e-05
    %v73 = vadd.f32 %v71, 1e-05
    %v74 = vrsqrt.pop %v72
    %v75 = vrsqrt.pop %v73
    %v76 = vmul.f32 %v60, %v74
    %v77 = vmul.f32 %v61, %v75
    %v79 = vlaneseq
    %v80 = vshrl.u32 %v79, 7
    %v81 = vsub.s32 0, %v80
    %v82 = vrot.slane %v48, %v81
    %v84 = vmul.f32 %v76, %v82
    %v85 = vmul.f32 %v77, %v82
    %v87 = vlaneseq
    %v88 = vshrl.u32 %v87, 7
    %v89 = vsub.s32 0, %v88
    %v90 = vrot.slane %v49, %v89
    %v92 = vadd.f32 %v84, %v90
    %v93 = vadd.f32 %v85, %v90
    %v94 = vpack.c.bf16 %v93, %v92
    %v95 = vld [vmem:[%s3] sm:$0xf]
    %v96 = vld [vmem:[%s3 + $0x4] sm:$0xf]
    %v97 = vld [vmem:[%s3 + $0x8] sm:$0xf]
    %v98 = vld [vmem:[%s3 + $0xc] sm:$0xf]
    %v99 = vld [vmem:[%s4] sm:$0x1]
    %v101 = vlaneseq
    %v102 = vshrl.u32 %v101, 7
    %v103 = vsub.s32 0, %v102
    %v104 = vrot.slane %v99, %v103
    %v110 = vunpack.c.l.b16 %v95
    %v111 = vunpack.c.l.b16 %v96
    %v112 = vunpack.c.l.b16 %v97
    %v113 = vunpack.c.l.b16 %v98
    %v114 = vpack.c.b16 %v111, %v110
    %v115 = vpack.c.b16 %v113, %v112
    %v119 = vsel %vm50, %v94, 0
    %121 = vmatprep.subr.bf16.mxu0 0
    %122 = vmatpush1.bf16.msra.mxu0 %v114
    %123 = vmatprep.subr.bf16.mxu0 0
    %124 = vmatpush1.bf16.msra.mxu0 %v115
    %125 = vmatprep.subr.bf16.mxu0 0
    %126 = vmatpush1.bf16.msra.mxu0 0
    %127 = vmatprep.subr.bf16.mxu0 0
    %128 = vmatpush1.bf16.msra.mxu0 0
    %129 = vmatprep.subr.bf16.mxu0 0
    %130 = vmatpush1.bf16.msra.mxu0 0
    %131 = vmatprep.subr.bf16.mxu0 0
    %132 = vmatpush1.bf16.msra.mxu0 0
    %133 = vmatprep.subr.bf16.mxu0 0
    %134 = vmatpush1.bf16.msra.mxu0 0
    %135 = vmatprep.subr.bf16.mxu0 0
    %136 = vmatpush1.bf16.msra.mxu0 0
    %137 = vmatprep.subr.bf16.mxu0 0
    %138 = vmatpush1.bf16.msra.mxu0 0
    %139 = vmatprep.subr.bf16.mxu0 0
    %140 = vmatpush1.bf16.msra.mxu0 0
    %141 = vmatprep.subr.bf16.mxu0 0
    %142 = vmatpush1.bf16.msra.mxu0 0
    %143 = vmatprep.subr.bf16.mxu0 0
    %144 = vmatpush1.bf16.msra.mxu0 0
    %145 = vmatprep.subr.bf16.mxu0 0
    %146 = vmatpush1.bf16.msra.mxu0 0
    %147 = vmatprep.subr.bf16.mxu0 0
    %148 = vmatpush1.bf16.msra.mxu0 0
    %149 = vmatprep.subr.bf16.mxu0 0
    %150 = vmatpush1.bf16.msra.mxu0 0
    %151 = vmatprep.subr.bf16.mxu0 0
    %152 = vmatpush1.bf16.msra.mxu0 0
    %153 = vmatprep.mubr.bf16.mxu0 0
    %154 = vmatmul.mubr.bf16.gmra.mrb[0].mxu0 %v119
    %v155 = vpop.f32.mrb[0].mxu0
    %v156 = vadd.f32 %v104, %v155
    %v157 = vpop.f32.mrb[0].mxu0
    %v158 = vpop.f32.mrb[0].mxu0
    %v159 = vadd.f32 %v104, %v158
    %v160 = vpop.f32.mrb[0].mxu0
    %161 = vdwg.mxu0
    %163 = vrot.lane.b32.xlu0 %v156, 120
    %v164 = vpop.permute.xlu0 %163
    %vm165 = vcmask 64512
    %v166 = vsel %vm165, %v156, 0
    %v168 = vsel %vm165, %v164, 0
    %170 = vmatprep.subr.mxu0 0.0
    %171 = vmatpush1.xpose.msra.mxu0 %v168
    %172 = vmatprep.subr.mxu0 0.0
    %173 = vmatpush1.xpose.msra.mxu0 0.0
    %174 = vmatprep.subr.mxu0 0.0
    %175 = vmatpush1.xpose.msra.mxu0 0.0
    %176 = vmatprep.subr.mxu0 0.0
    %177 = vmatpush1.xpose.msra.mxu0 0.0
    %178 = vmatprep.subr.mxu0 0.0
    %179 = vmatpush1.xpose.msra.mxu0 0.0
    %180 = vmatprep.subr.mxu0 0.0
    %181 = vmatpush1.xpose.msra.mxu0 0.0
    %182 = vmatprep.subr.mxu0 0.0
    %183 = vmatpush1.xpose.msra.mxu0 0.0
    %184 = vmatprep.subr.mxu0 0.0
    %185 = vmatpush1.xpose.msra.mxu0 0.0
    %186 = vmatprep.subr.mxu0 0.0
    %187 = vmatpush1.xpose.msra.mxu0 0.0
    %188 = vmatprep.subr.mxu0 0.0
    %189 = vmatpush1.xpose.msra.mxu0 0.0
    %190 = vmatprep.subr.mxu0 0.0
    %191 = vmatpush1.xpose.msra.mxu0 0.0
    %192 = vmatprep.subr.mxu0 0.0
    %193 = vmatpush1.xpose.msra.mxu0 0.0
    %194 = vmatprep.subr.mxu0 0.0
    %195 = vmatpush1.xpose.msra.mxu0 0.0
    %196 = vmatprep.subr.mxu0 0.0
    %197 = vmatpush1.xpose.msra.mxu0 0.0
    %198 = vmatprep.subr.mxu0 0.0
    %199 = vmatpush1.xpose.msra.mxu0 0.0
    %200 = vmatprep.subr.mxu0 0.0
    %201 = vmatpush1.xpose.msra.mxu0 0.0
    %202 = vmatprep.subr.mxu0 0.0
    %203 = vmatpush1.xpose.msra.mxu0 0.0
    %204 = vmatprep.subr.mxu0 0.0
    %205 = vmatpush1.xpose.msra.mxu0 0.0
    %206 = vmatprep.subr.mxu0 0.0
    %207 = vmatpush1.xpose.msra.mxu0 0.0
    %208 = vmatprep.subr.mxu0 0.0
    %209 = vmatpush1.xpose.msra.mxu0 0.0
    %210 = vmatprep.subr.mxu0 0.0
    %211 = vmatpush1.xpose.msra.mxu0 0.0
    %212 = vmatprep.subr.mxu0 0.0
    %213 = vmatpush1.xpose.msra.mxu0 0.0
    %214 = vmatprep.subr.mxu0 0.0
    %215 = vmatpush1.xpose.msra.mxu0 0.0
    %216 = vmatprep.subr.mxu0 0.0
    %217 = vmatpush1.xpose.msra.mxu0 0.0
    %218 = vmatprep.subr.mxu0 0.0
    %219 = vmatpush1.xpose.msra.mxu0 0.0
    %220 = vmatprep.subr.mxu0 0.0
    %221 = vmatpush1.xpose.msra.mxu0 0.0
    %222 = vmatprep.subr.mxu0 0.0
    %223 = vmatpush1.xpose.msra.mxu0 0.0
    %224 = vmatprep.subr.mxu0 0.0
    %225 = vmatpush1.xpose.msra.mxu0 0.0
    %226 = vmatprep.subr.mxu0 0.0
    %227 = vmatpush1.xpose.msra.mxu0 0.0
    %228 = vmatprep.subr.mxu0 0.0
    %229 = vmatpush1.xpose.msra.mxu0 0.0
    %230 = vmatprep.subr.mxu0 0.0
    %231 = vmatpush1.xpose.msra.mxu0 0.0
    %232 = vmatprep.subr.mxu0 0.0
    %233 = vmatpush1.xpose.msra.mxu0 0.0
    %234 = vmatprep.mubr.f32.mxu0 0.0
    %235 = vmatmul.mubr.f32.gmra.mrb[0].mxu0 %v166
    %v236 = vpop.f32.mrb[0].mxu0
    %v237 = vadd.f32 0.0, %v236
    %v238 = vpop.f32.mrb[0].mxu0
    %239 = vdwg.mxu0
    %241 = vrot.lane.b32.xlu0 %v159, 120
    %v242 = vpop.permute.xlu0 %241
    %v243 = vsel %vm165, %v159, 0
    %v245 = vsel %vm165, %v242, 0
    %247 = vmatprep.subr.mxu0 0.0
    %248 = vmatpush1.xpose.msra.mxu0 %v245
    %249 = vmatprep.subr.mxu0 0.0
    %250 = vmatpush1.xpose.msra.mxu0 0.0
    %251 = vmatprep.subr.mxu0 0.0
    %252 = vmatpush1.xpose.msra.mxu0 0.0
    %253 = vmatprep.subr.mxu0 0.0
    %254 = vmatpush1.xpose.msra.mxu0 0.0
    %255 = vmatprep.subr.mxu0 0.0
    %256 = vmatpush1.xpose.msra.mxu0 0.0
    %257 = vmatprep.subr.mxu0 0.0
    %258 = vmatpush1.xpose.msra.mxu0 0.0
    %259 = vmatprep.subr.mxu0 0.0
    %260 = vmatpush1.xpose.msra.mxu0 0.0
    %261 = vmatprep.subr.mxu0 0.0
    %262 = vmatpush1.xpose.msra.mxu0 0.0
    %263 = vmatprep.subr.mxu0 0.0
    %264 = vmatpush1.xpose.msra.mxu0 0.0
    %265 = vmatprep.subr.mxu0 0.0
    %266 = vmatpush1.xpose.msra.mxu0 0.0
    %267 = vmatprep.subr.mxu0 0.0
    %268 = vmatpush1.xpose.msra.mxu0 0.0
    %269 = vmatprep.subr.mxu0 0.0
    %270 = vmatpush1.xpose.msra.mxu0 0.0
    %271 = vmatprep.subr.mxu0 0.0
    %272 = vmatpush1.xpose.msra.mxu0 0.0
    %273 = vmatprep.subr.mxu0 0.0
    %274 = vmatpush1.xpose.msra.mxu0 0.0
    %275 = vmatprep.subr.mxu0 0.0
    %276 = vmatpush1.xpose.msra.mxu0 0.0
    %277 = vmatprep.subr.mxu0 0.0
    %278 = vmatpush1.xpose.msra.mxu0 0.0
    %279 = vmatprep.subr.mxu0 0.0
    %280 = vmatpush1.xpose.msra.mxu0 0.0
    %281 = vmatprep.subr.mxu0 0.0
    %282 = vmatpush1.xpose.msra.mxu0 0.0
    %283 = vmatprep.subr.mxu0 0.0
    %284 = vmatpush1.xpose.msra.mxu0 0.0
    %285 = vmatprep.subr.mxu0 0.0
    %286 = vmatpush1.xpose.msra.mxu0 0.0
    %287 = vmatprep.subr.mxu0 0.0
    %288 = vmatpush1.xpose.msra.mxu0 0.0
    %289 = vmatprep.subr.mxu0 0.0
    %290 = vmatpush1.xpose.msra.mxu0 0.0
    %291 = vmatprep.subr.mxu0 0.0
    %292 = vmatpush1.xpose.msra.mxu0 0.0
    %293 = vmatprep.subr.mxu0 0.0
    %294 = vmatpush1.xpose.msra.mxu0 0.0
    %295 = vmatprep.subr.mxu0 0.0
    %296 = vmatpush1.xpose.msra.mxu0 0.0
    %297 = vmatprep.subr.mxu0 0.0
    %298 = vmatpush1.xpose.msra.mxu0 0.0
    %299 = vmatprep.subr.mxu0 0.0
    %300 = vmatpush1.xpose.msra.mxu0 0.0
    %301 = vmatprep.subr.mxu0 0.0
    %302 = vmatpush1.xpose.msra.mxu0 0.0
    %303 = vmatprep.subr.mxu0 0.0
    %304 = vmatpush1.xpose.msra.mxu0 0.0
    %305 = vmatprep.subr.mxu0 0.0
    %306 = vmatpush1.xpose.msra.mxu0 0.0
    %307 = vmatprep.subr.mxu0 0.0
    %308 = vmatpush1.xpose.msra.mxu0 0.0
    %309 = vmatprep.subr.mxu0 0.0
    %310 = vmatpush1.xpose.msra.mxu0 0.0
    %311 = vmatprep.mubr.f32.mxu0 0.0
    %312 = vmatmul.mubr.f32.gmra.mrb[0].mxu0 %v243
    %v313 = vpop.f32.mrb[0].mxu0
    %v314 = vadd.f32 0.0, %v313
    %v315 = vpop.f32.mrb[0].mxu0
    %316 = vdwg.mxu0
    %v317 = vsel %vm165, %v237, -inf
    %318 = vmax.xlane.f32.xlu0 %v317
    %v319 = vpop.xlane.xlu0 %318
    %v320 = vsel %vm165, %v314, -inf
    %321 = vmax.xlane.f32.xlu0 %v320
    %v322 = vpop.xlane.xlu0 %321
    %v323 = vsub.f32 %v237, %v319
    %v324 = vsub.f32 %v314, %v322
    %v325 = vmul.f32 %v323, 1.442695
    %v326 = vpow.pop %v325
    %v327 = vmul.f32 %v324, 1.442695
    %v328 = vpow.pop %v327
    %v329 = vsel %vm165, %v326, 0.0
    %330 = vadd.xlane.f32.xlu0 %v329
    %v331 = vpop.xlane.xlu0 %330
    %v332 = vsel %vm165, %v328, 0.0
    %333 = vadd.xlane.f32.xlu0 %v332
    %v334 = vpop.xlane.xlu0 %333
    %v335 = vrcp.pop %v331
    %v336 = vrcp.pop %v334
    %v337 = vmul.f32 %v326, %v335
    %v338 = vmul.f32 %v328, %v336
    %339 = vrot.lane.b32.xlu0 %v156, 112
    %v340 = vpop.permute.xlu0 %339
    %v343 = vsel %vm165, %v337, 0
    %345 = vmatprep.subr.mxu0 0.0
    %346 = vmatpush1.msra.mxu0 %v340
    %347 = vmatprep.subr.mxu0 0.0
    %348 = vmatpush1.msra.mxu0 0.0
    %349 = vmatprep.subr.mxu0 0.0
    %350 = vmatpush1.msra.mxu0 0.0
    %351 = vmatprep.subr.mxu0 0.0
    %352 = vmatpush1.msra.mxu0 0.0
    %353 = vmatprep.subr.mxu0 0.0
    %354 = vmatpush1.msra.mxu0 0.0
    %355 = vmatprep.subr.mxu0 0.0
    %356 = vmatpush1.msra.mxu0 0.0
    %357 = vmatprep.subr.mxu0 0.0
    %358 = vmatpush1.msra.mxu0 0.0
    %359 = vmatprep.subr.mxu0 0.0
    %360 = vmatpush1.msra.mxu0 0.0
    %361 = vmatprep.subr.mxu0 0.0
    %362 = vmatpush1.msra.mxu0 0.0
    %363 = vmatprep.subr.mxu0 0.0
    %364 = vmatpush1.msra.mxu0 0.0
    %365 = vmatprep.subr.mxu0 0.0
    %366 = vmatpush1.msra.mxu0 0.0
    %367 = vmatprep.subr.mxu0 0.0
    %368 = vmatpush1.msra.mxu0 0.0
    %369 = vmatprep.subr.mxu0 0.0
    %370 = vmatpush1.msra.mxu0 0.0
    %371 = vmatprep.subr.mxu0 0.0
    %372 = vmatpush1.msra.mxu0 0.0
    %373 = vmatprep.subr.mxu0 0.0
    %374 = vmatpush1.msra.mxu0 0.0
    %375 = vmatprep.subr.mxu0 0.0
    %376 = vmatpush1.msra.mxu0 0.0
    %377 = vmatprep.subr.mxu0 0.0
    %378 = vmatpush1.msra.mxu0 0.0
    %379 = vmatprep.subr.mxu0 0.0
    %380 = vmatpush1.msra.mxu0 0.0
    %381 = vmatprep.subr.mxu0 0.0
    %382 = vmatpush1.msra.mxu0 0.0
    %383 = vmatprep.subr.mxu0 0.0
    %384 = vmatpush1.msra.mxu0 0.0
    %385 = vmatprep.subr.mxu0 0.0
    %386 = vmatpush1.msra.mxu0 0.0
    %387 = vmatprep.subr.mxu0 0.0
    %388 = vmatpush1.msra.mxu0 0.0
    %389 = vmatprep.subr.mxu0 0.0
    %390 = vmatpush1.msra.mxu0 0.0
    %391 = vmatprep.subr.mxu0 0.0
    %392 = vmatpush1.msra.mxu0 0.0
    %393 = vmatprep.subr.mxu0 0.0
    %394 = vmatpush1.msra.mxu0 0.0
    %395 = vmatprep.subr.mxu0 0.0
    %396 = vmatpush1.msra.mxu0 0.0
    %397 = vmatprep.subr.mxu0 0.0
    %398 = vmatpush1.msra.mxu0 0.0
    %399 = vmatprep.subr.mxu0 0.0
    %400 = vmatpush1.msra.mxu0 0.0
    %401 = vmatprep.subr.mxu0 0.0
    %402 = vmatpush1.msra.mxu0 0.0
    %403 = vmatprep.subr.mxu0 0.0
    %404 = vmatpush1.msra.mxu0 0.0
    %405 = vmatprep.subr.mxu0 0.0
    %406 = vmatpush1.msra.mxu0 0.0
    %407 = vmatprep.subr.mxu0 0.0
    %408 = vmatpush1.msra.mxu0 0.0
    %409 = vmatprep.mubr.f32.mxu0 0.0
    %410 = vmatmul.mubr.f32.gmra.mrb[0].mxu0 %v343
    %v411 = vpop.f32.mrb[0].mxu0
    %v412 = vadd.f32 0.0, %v411
    %v413 = vpop.f32.mrb[0].mxu0
    %414 = vdwg.mxu0
    %415 = vrot.lane.b32.xlu0 %v159, 112
    %v416 = vpop.permute.xlu0 %415
    %v419 = vsel %vm165, %v338, 0
    %421 = vmatprep.subr.mxu0 0.0
    %422 = vmatpush1.msra.mxu0 %v416
    %423 = vmatprep.subr.mxu0 0.0
    %424 = vmatpush1.msra.mxu0 0.0
    %425 = vmatprep.subr.mxu0 0.0
    %426 = vmatpush1.msra.mxu0 0.0
    %427 = vmatprep.subr.mxu0 0.0
    %428 = vmatpush1.msra.mxu0 0.0
    %429 = vmatprep.subr.mxu0 0.0
    %430 = vmatpush1.msra.mxu0 0.0
    %431 = vmatprep.subr.mxu0 0.0
    %432 = vmatpush1.msra.mxu0 0.0
    %433 = vmatprep.subr.mxu0 0.0
    %434 = vmatpush1.msra.mxu0 0.0
    %435 = vmatprep.subr.mxu0 0.0
    %436 = vmatpush1.msra.mxu0 0.0
    %437 = vmatprep.subr.mxu0 0.0
    %438 = vmatpush1.msra.mxu0 0.0
    %439 = vmatprep.subr.mxu0 0.0
    %440 = vmatpush1.msra.mxu0 0.0
    %441 = vmatprep.subr.mxu0 0.0
    %442 = vmatpush1.msra.mxu0 0.0
    %443 = vmatprep.subr.mxu0 0.0
    %444 = vmatpush1.msra.mxu0 0.0
    %445 = vmatprep.subr.mxu0 0.0
    %446 = vmatpush1.msra.mxu0 0.0
    %447 = vmatprep.subr.mxu0 0.0
    %448 = vmatpush1.msra.mxu0 0.0
    %449 = vmatprep.subr.mxu0 0.0
    %450 = vmatpush1.msra.mxu0 0.0
    %451 = vmatprep.subr.mxu0 0.0
    %452 = vmatpush1.msra.mxu0 0.0
    %453 = vmatprep.subr.mxu0 0.0
    %454 = vmatpush1.msra.mxu0 0.0
    %455 = vmatprep.subr.mxu0 0.0
    %456 = vmatpush1.msra.mxu0 0.0
    %457 = vmatprep.subr.mxu0 0.0
    %458 = vmatpush1.msra.mxu0 0.0
    %459 = vmatprep.subr.mxu0 0.0
    %460 = vmatpush1.msra.mxu0 0.0
    %461 = vmatprep.subr.mxu0 0.0
    %462 = vmatpush1.msra.mxu0 0.0
    %463 = vmatprep.subr.mxu0 0.0
    %464 = vmatpush1.msra.mxu0 0.0
    %465 = vmatprep.subr.mxu0 0.0
    %466 = vmatpush1.msra.mxu0 0.0
    %467 = vmatprep.subr.mxu0 0.0
    %468 = vmatpush1.msra.mxu0 0.0
    %469 = vmatprep.subr.mxu0 0.0
    %470 = vmatpush1.msra.mxu0 0.0
    %471 = vmatprep.subr.mxu0 0.0
    %472 = vmatpush1.msra.mxu0 0.0
    %473 = vmatprep.subr.mxu0 0.0
    %474 = vmatpush1.msra.mxu0 0.0
    %475 = vmatprep.subr.mxu0 0.0
    %476 = vmatpush1.msra.mxu0 0.0
    %477 = vmatprep.subr.mxu0 0.0
    %478 = vmatpush1.msra.mxu0 0.0
    %479 = vmatprep.subr.mxu0 0.0
    %480 = vmatpush1.msra.mxu0 0.0
    %481 = vmatprep.subr.mxu0 0.0
    %482 = vmatpush1.msra.mxu0 0.0
    %483 = vmatprep.subr.mxu0 0.0
    %484 = vmatpush1.msra.mxu0 0.0
    %485 = vmatprep.mubr.f32.mxu0 0.0
    %486 = vmatmul.mubr.f32.gmra.mrb[0].mxu0 %v419
    %v487 = vpop.f32.mrb[0].mxu0
    %v488 = vadd.f32 0.0, %v487
    %v489 = vpop.f32.mrb[0].mxu0
    %490 = vdwg.mxu0
    %491 = vrot.lane.b32.xlu0 %v156, 104
    %v492 = vpop.permute.xlu0 %491
    %493 = vrot.lane.b32.xlu0 %v156, 96
    %v494 = vpop.permute.xlu0 %493
    %v495 = vsel %vm165, %v492, 0
    %v497 = vsel %vm165, %v494, 0
    %499 = vmatprep.subr.mxu0 0.0
    %500 = vmatpush1.xpose.msra.mxu0 %v497
    %501 = vmatprep.subr.mxu0 0.0
    %502 = vmatpush1.xpose.msra.mxu0 0.0
    %503 = vmatprep.subr.mxu0 0.0
    %504 = vmatpush1.xpose.msra.mxu0 0.0
    %505 = vmatprep.subr.mxu0 0.0
    %506 = vmatpush1.xpose.msra.mxu0 0.0
    %507 = vmatprep.subr.mxu0 0.0
    %508 = vmatpush1.xpose.msra.mxu0 0.0
    %509 = vmatprep.subr.mxu0 0.0
    %510 = vmatpush1.xpose.msra.mxu0 0.0
    %511 = vmatprep.subr.mxu0 0.0
    %512 = vmatpush1.xpose.msra.mxu0 0.0
    %513 = vmatprep.subr.mxu0 0.0
    %514 = vmatpush1.xpose.msra.mxu0 0.0
    %515 = vmatprep.subr.mxu0 0.0
    %516 = vmatpush1.xpose.msra.mxu0 0.0
    %517 = vmatprep.subr.mxu0 0.0
    %518 = vmatpush1.xpose.msra.mxu0 0.0
    %519 = vmatprep.subr.mxu0 0.0
    %520 = vmatpush1.xpose.msra.mxu0 0.0
    %521 = vmatprep.subr.mxu0 0.0
    %522 = vmatpush1.xpose.msra.mxu0 0.0
    %523 = vmatprep.subr.mxu0 0.0
    %524 = vmatpush1.xpose.msra.mxu0 0.0
    %525 = vmatprep.subr.mxu0 0.0
    %526 = vmatpush1.xpose.msra.mxu0 0.0
    %527 = vmatprep.subr.mxu0 0.0
    %528 = vmatpush1.xpose.msra.mxu0 0.0
    %529 = vmatprep.subr.mxu0 0.0
    %530 = vmatpush1.xpose.msra.mxu0 0.0
    %531 = vmatprep.subr.mxu0 0.0
    %532 = vmatpush1.xpose.msra.mxu0 0.0
    %533 = vmatprep.subr.mxu0 0.0
    %534 = vmatpush1.xpose.msra.mxu0 0.0
    %535 = vmatprep.subr.mxu0 0.0
    %536 = vmatpush1.xpose.msra.mxu0 0.0
    %537 = vmatprep.subr.mxu0 0.0
    %538 = vmatpush1.xpose.msra.mxu0 0.0
    %539 = vmatprep.subr.mxu0 0.0
    %540 = vmatpush1.xpose.msra.mxu0 0.0
    %541 = vmatprep.subr.mxu0 0.0
    %542 = vmatpush1.xpose.msra.mxu0 0.0
    %543 = vmatprep.subr.mxu0 0.0
    %544 = vmatpush1.xpose.msra.mxu0 0.0
    %545 = vmatprep.subr.mxu0 0.0
    %546 = vmatpush1.xpose.msra.mxu0 0.0
    %547 = vmatprep.subr.mxu0 0.0
    %548 = vmatpush1.xpose.msra.mxu0 0.0
    %549 = vmatprep.subr.mxu0 0.0
    %550 = vmatpush1.xpose.msra.mxu0 0.0
    %551 = vmatprep.subr.mxu0 0.0
    %552 = vmatpush1.xpose.msra.mxu0 0.0
    %553 = vmatprep.subr.mxu0 0.0
    %554 = vmatpush1.xpose.msra.mxu0 0.0
    %555 = vmatprep.subr.mxu0 0.0
    %556 = vmatpush1.xpose.msra.mxu0 0.0
    %557 = vmatprep.subr.mxu0 0.0
    %558 = vmatpush1.xpose.msra.mxu0 0.0
    %559 = vmatprep.subr.mxu0 0.0
    %560 = vmatpush1.xpose.msra.mxu0 0.0
    %561 = vmatprep.subr.mxu0 0.0
    %562 = vmatpush1.xpose.msra.mxu0 0.0
    %563 = vmatprep.mubr.f32.mxu0 0.0
    %564 = vmatmul.mubr.f32.gmra.mrb[0].mxu0 %v495
    %v565 = vpop.f32.mrb[0].mxu0
    %v566 = vadd.f32 0.0, %v565
    %v567 = vpop.f32.mrb[0].mxu0
    %568 = vdwg.mxu0
    %569 = vrot.lane.b32.xlu0 %v159, 104
    %v570 = vpop.permute.xlu0 %569
    %571 = vrot.lane.b32.xlu0 %v159, 96
    %v572 = vpop.permute.xlu0 %571
    %v573 = vsel %vm165, %v570, 0
    %v575 = vsel %vm165, %v572, 0
    %577 = vmatprep.subr.mxu0 0.0
    %578 = vmatpush1.xpose.msra.mxu0 %v575
    %579 = vmatprep.subr.mxu0 0.0
    %580 = vmatpush1.xpose.msra.mxu0 0.0
    %581 = vmatprep.subr.mxu0 0.0
    %582 = vmatpush1.xpose.msra.mxu0 0.0
    %583 = vmatprep.subr.mxu0 0.0
    %584 = vmatpush1.xpose.msra.mxu0 0.0
    %585 = vmatprep.subr.mxu0 0.0
    %586 = vmatpush1.xpose.msra.mxu0 0.0
    %587 = vmatprep.subr.mxu0 0.0
    %588 = vmatpush1.xpose.msra.mxu0 0.0
    %589 = vmatprep.subr.mxu0 0.0
    %590 = vmatpush1.xpose.msra.mxu0 0.0
    %591 = vmatprep.subr.mxu0 0.0
    %592 = vmatpush1.xpose.msra.mxu0 0.0
    %593 = vmatprep.subr.mxu0 0.0
    %594 = vmatpush1.xpose.msra.mxu0 0.0
    %595 = vmatprep.subr.mxu0 0.0
    %596 = vmatpush1.xpose.msra.mxu0 0.0
    %597 = vmatprep.subr.mxu0 0.0
    %598 = vmatpush1.xpose.msra.mxu0 0.0
    %599 = vmatprep.subr.mxu0 0.0
    %600 = vmatpush1.xpose.msra.mxu0 0.0
    %601 = vmatprep.subr.mxu0 0.0
    %602 = vmatpush1.xpose.msra.mxu0 0.0
    %603 = vmatprep.subr.mxu0 0.0
    %604 = vmatpush1.xpose.msra.mxu0 0.0
    %605 = vmatprep.subr.mxu0 0.0
    %606 = vmatpush1.xpose.msra.mxu0 0.0
    %607 = vmatprep.subr.mxu0 0.0
    %608 = vmatpush1.xpose.msra.mxu0 0.0
    %609 = vmatprep.subr.mxu0 0.0
    %610 = vmatpush1.xpose.msra.mxu0 0.0
    %611 = vmatprep.subr.mxu0 0.0
    %612 = vmatpush1.xpose.msra.mxu0 0.0
    %613 = vmatprep.subr.mxu0 0.0
    %614 = vmatpush1.xpose.msra.mxu0 0.0
    %615 = vmatprep.subr.mxu0 0.0
    %616 = vmatpush1.xpose.msra.mxu0 0.0
    %617 = vmatprep.subr.mxu0 0.0
    %618 = vmatpush1.xpose.msra.mxu0 0.0
    %619 = vmatprep.subr.mxu0 0.0
    %620 = vmatpush1.xpose.msra.mxu0 0.0
    %621 = vmatprep.subr.mxu0 0.0
    %622 = vmatpush1.xpose.msra.mxu0 0.0
    %623 = vmatprep.subr.mxu0 0.0
    %624 = vmatpush1.xpose.msra.mxu0 0.0
    %625 = vmatprep.subr.mxu0 0.0
    %626 = vmatpush1.xpose.msra.mxu0 0.0
    %627 = vmatprep.subr.mxu0 0.0
    %628 = vmatpush1.xpose.msra.mxu0 0.0
    %629 = vmatprep.subr.mxu0 0.0
    %630 = vmatpush1.xpose.msra.mxu0 0.0
    %631 = vmatprep.subr.mxu0 0.0
    %632 = vmatpush1.xpose.msra.mxu0 0.0
    %633 = vmatprep.subr.mxu0 0.0
    %634 = vmatpush1.xpose.msra.mxu0 0.0
    %635 = vmatprep.subr.mxu0 0.0
    %636 = vmatpush1.xpose.msra.mxu0 0.0
    %637 = vmatprep.subr.mxu0 0.0
    %638 = vmatpush1.xpose.msra.mxu0 0.0
    %639 = vmatprep.subr.mxu0 0.0
    %640 = vmatpush1.xpose.msra.mxu0 0.0
    %641 = vmatprep.mubr.f32.mxu0 0.0
    %642 = vmatmul.mubr.f32.gmra.mrb[0].mxu0 %v573
    %v643 = vpop.f32.mrb[0].mxu0
    %v644 = vadd.f32 0.0, %v643
    %v645 = vpop.f32.mrb[0].mxu0
    %646 = vdwg.mxu0
    %v647 = vsel %vm165, %v566, -inf
    %648 = vmax.xlane.f32.xlu0 %v647
    %v649 = vpop.xlane.xlu0 %648
    %v650 = vsel %vm165, %v644, -inf
    %651 = vmax.xlane.f32.xlu0 %v650
    %v652 = vpop.xlane.xlu0 %651
    %v653 = vsub.f32 %v566, %v649
    %v654 = vsub.f32 %v644, %v652
    %v655 = vmul.f32 %v653, 1.442695
    %v656 = vpow.pop %v655
    %v657 = vmul.f32 %v654, 1.442695
    %v658 = vpow.pop %v657
    %v659 = vsel %vm165, %v656, 0.0
    %660 = vadd.xlane.f32.xlu0 %v659
    %v661 = vpop.xlane.xlu0 %660
    %v662 = vsel %vm165, %v658, 0.0
    %663 = vadd.xlane.f32.xlu0 %v662
    %v664 = vpop.xlane.xlu0 %663
    %v665 = vrcp.pop %v661
    %v666 = vrcp.pop %v664
    %v667 = vmul.f32 %v656, %v665
    %v668 = vmul.f32 %v658, %v666
    %669 = vrot.lane.b32.xlu0 %v156, 88
    %v670 = vpop.permute.xlu0 %669
    %v673 = vsel %vm165, %v667, 0
    %675 = vmatprep.subr.mxu0 0.0
    %676 = vmatpush1.msra.mxu0 %v670
    %677 = vmatprep.subr.mxu0 0.0
    %678 = vmatpush1.msra.mxu0 0.0
    %679 = vmatprep.subr.mxu0 0.0
    %680 = vmatpush1.msra.mxu0 0.0
    %681 = vmatprep.subr.mxu0 0.0
    %682 = vmatpush1.msra.mxu0 0.0
    %683 = vmatprep.subr.mxu0 0.0
    %684 = vmatpush1.msra.mxu0 0.0
    %685 = vmatprep.subr.mxu0 0.0
    %686 = vmatpush1.msra.mxu0 0.0
    %687 = vmatprep.subr.mxu0 0.0
    %688 = vmatpush1.msra.mxu0 0.0
    %689 = vmatprep.subr.mxu0 0.0
    %690 = vmatpush1.msra.mxu0 0.0
    %691 = vmatprep.subr.mxu0 0.0
    %692 = vmatpush1.msra.mxu0 0.0
    %693 = vmatprep.subr.mxu0 0.0
    %694 = vmatpush1.msra.mxu0 0.0
    %695 = vmatprep.subr.mxu0 0.0
    %696 = vmatpush1.msra.mxu0 0.0
    %697 = vmatprep.subr.mxu0 0.0
    %698 = vmatpush1.msra.mxu0 0.0
    %699 = vmatprep.subr.mxu0 0.0
    %700 = vmatpush1.msra.mxu0 0.0
    %701 = vmatprep.subr.mxu0 0.0
    %702 = vmatpush1.msra.mxu0 0.0
    %703 = vmatprep.subr.mxu0 0.0
    %704 = vmatpush1.msra.mxu0 0.0
    %705 = vmatprep.subr.mxu0 0.0
    %706 = vmatpush1.msra.mxu0 0.0
    %707 = vmatprep.subr.mxu0 0.0
    %708 = vmatpush1.msra.mxu0 0.0
    %709 = vmatprep.subr.mxu0 0.0
    %710 = vmatpush1.msra.mxu0 0.0
    %711 = vmatprep.subr.mxu0 0.0
    %712 = vmatpush1.msra.mxu0 0.0
    %713 = vmatprep.subr.mxu0 0.0
    %714 = vmatpush1.msra.mxu0 0.0
    %715 = vmatprep.subr.mxu0 0.0
    %716 = vmatpush1.msra.mxu0 0.0
    %717 = vmatprep.subr.mxu0 0.0
    %718 = vmatpush1.msra.mxu0 0.0
    %719 = vmatprep.subr.mxu0 0.0
    %720 = vmatpush1.msra.mxu0 0.0
    %721 = vmatprep.subr.mxu0 0.0
    %722 = vmatpush1.msra.mxu0 0.0
    %723 = vmatprep.subr.mxu0 0.0
    %724 = vmatpush1.msra.mxu0 0.0
    %725 = vmatprep.subr.mxu0 0.0
    %726 = vmatpush1.msra.mxu0 0.0
    %727 = vmatprep.subr.mxu0 0.0
    %728 = vmatpush1.msra.mxu0 0.0
    %729 = vmatprep.subr.mxu0 0.0
    %730 = vmatpush1.msra.mxu0 0.0
    %731 = vmatprep.subr.mxu0 0.0
    %732 = vmatpush1.msra.mxu0 0.0
    %733 = vmatprep.subr.mxu0 0.0
    %734 = vmatpush1.msra.mxu0 0.0
    %735 = vmatprep.subr.mxu0 0.0
    %736 = vmatpush1.msra.mxu0 0.0
    %737 = vmatprep.subr.mxu0 0.0
    %738 = vmatpush1.msra.mxu0 0.0
    %739 = vmatprep.mubr.f32.mxu0 0.0
    %740 = vmatmul.mubr.f32.gmra.mrb[0].mxu0 %v673
    %v741 = vpop.f32.mrb[0].mxu0
    %v742 = vadd.f32 0.0, %v741
    %v743 = vpop.f32.mrb[0].mxu0
    %744 = vdwg.mxu0
    %745 = vrot.lane.b32.xlu0 %v159, 88
    %v746 = vpop.permute.xlu0 %745
    %v749 = vsel %vm165, %v668, 0
    %751 = vmatprep.subr.mxu0 0.0
    %752 = vmatpush1.msra.mxu0 %v746
    %753 = vmatprep.subr.mxu0 0.0
    %754 = vmatpush1.msra.mxu0 0.0
    %755 = vmatprep.subr.mxu0 0.0
    %756 = vmatpush1.msra.mxu0 0.0
    %757 = vmatprep.subr.mxu0 0.0
    %758 = vmatpush1.msra.mxu0 0.0
    %759 = vmatprep.subr.mxu0 0.0
    %760 = vmatpush1.msra.mxu0 0.0
    %761 = vmatprep.subr.mxu0 0.0
    %762 = vmatpush1.msra.mxu0 0.0
    %763 = vmatprep.subr.mxu0 0.0
    %764 = vmatpush1.msra.mxu0 0.0
    %765 = vmatprep.subr.mxu0 0.0
    %766 = vmatpush1.msra.mxu0 0.0
    %767 = vmatprep.subr.mxu0 0.0
    %768 = vmatpush1.msra.mxu0 0.0
    %769 = vmatprep.subr.mxu0 0.0
    %770 = vmatpush1.msra.mxu0 0.0
    %771 = vmatprep.subr.mxu0 0.0
    %772 = vmatpush1.msra.mxu0 0.0
    %773 = vmatprep.subr.mxu0 0.0
    %774 = vmatpush1.msra.mxu0 0.0
    %775 = vmatprep.subr.mxu0 0.0
    %776 = vmatpush1.msra.mxu0 0.0
    %777 = vmatprep.subr.mxu0 0.0
    %778 = vmatpush1.msra.mxu0 0.0
    %779 = vmatprep.subr.mxu0 0.0
    %780 = vmatpush1.msra.mxu0 0.0
    %781 = vmatprep.subr.mxu0 0.0
    %782 = vmatpush1.msra.mxu0 0.0
    %783 = vmatprep.subr.mxu0 0.0
    %784 = vmatpush1.msra.mxu0 0.0
    %785 = vmatprep.subr.mxu0 0.0
    %786 = vmatpush1.msra.mxu0 0.0
    %787 = vmatprep.subr.mxu0 0.0
    %788 = vmatpush1.msra.mxu0 0.0
    %789 = vmatprep.subr.mxu0 0.0
    %790 = vmatpush1.msra.mxu0 0.0
    %791 = vmatprep.subr.mxu0 0.0
    %792 = vmatpush1.msra.mxu0 0.0
    %793 = vmatprep.subr.mxu0 0.0
    %794 = vmatpush1.msra.mxu0 0.0
    %795 = vmatprep.subr.mxu0 0.0
    %796 = vmatpush1.msra.mxu0 0.0
    %797 = vmatprep.subr.mxu0 0.0
    %798 = vmatpush1.msra.mxu0 0.0
    %799 = vmatprep.subr.mxu0 0.0
    %800 = vmatpush1.msra.mxu0 0.0
    %801 = vmatprep.subr.mxu0 0.0
    %802 = vmatpush1.msra.mxu0 0.0
    %803 = vmatprep.subr.mxu0 0.0
    %804 = vmatpush1.msra.mxu0 0.0
    %805 = vmatprep.subr.mxu0 0.0
    %806 = vmatpush1.msra.mxu0 0.0
    %807 = vmatprep.subr.mxu0 0.0
    %808 = vmatpush1.msra.mxu0 0.0
    %809 = vmatprep.subr.mxu0 0.0
    %810 = vmatpush1.msra.mxu0 0.0
    %811 = vmatprep.subr.mxu0 0.0
    %812 = vmatpush1.msra.mxu0 0.0
    %813 = vmatprep.subr.mxu0 0.0
    %814 = vmatpush1.msra.mxu0 0.0
    %815 = vmatprep.mubr.f32.mxu0 0.0
    %816 = vmatmul.mubr.f32.gmra.mrb[0].mxu0 %v749
    %v817 = vpop.f32.mrb[0].mxu0
    %v818 = vadd.f32 0.0, %v817
    %v819 = vpop.f32.mrb[0].mxu0
    %820 = vdwg.mxu0
    %821 = vrot.lane.b32.xlu0 %v156, 80
    %v822 = vpop.permute.xlu0 %821
    %823 = vrot.lane.b32.xlu0 %v156, 72
    %v824 = vpop.permute.xlu0 %823
    %v825 = vsel %vm165, %v822, 0
    %v827 = vsel %vm165, %v824, 0
    %829 = vmatprep.subr.mxu0 0.0
    %830 = vmatpush1.xpose.msra.mxu0 %v827
    %831 = vmatprep.subr.mxu0 0.0
    %832 = vmatpush1.xpose.msra.mxu0 0.0
    %833 = vmatprep.subr.mxu0 0.0
    %834 = vmatpush1.xpose.msra.mxu0 0.0
    %835 = vmatprep.subr.mxu0 0.0
    %836 = vmatpush1.xpose.msra.mxu0 0.0
    %837 = vmatprep.subr.mxu0 0.0
    %838 = vmatpush1.xpose.msra.mxu0 0.0
    %839 = vmatprep.subr.mxu0 0.0
    %840 = vmatpush1.xpose.msra.mxu0 0.0
    %841 = vmatprep.subr.mxu0 0.0
    %842 = vmatpush1.xpose.msra.mxu0 0.0
    %843 = vmatprep.subr.mxu0 0.0
    %844 = vmatpush1.xpose.msra.mxu0 0.0
    %845 = vmatprep.subr.mxu0 0.0
    %846 = vmatpush1.xpose.msra.mxu0 0.0
    %847 = vmatprep.subr.mxu0 0.0
    %848 = vmatpush1.xpose.msra.mxu0 0.0
    %849 = vmatprep.subr.mxu0 0.0
    %850 = vmatpush1.xpose.msra.mxu0 0.0
    %851 = vmatprep.subr.mxu0 0.0
    %852 = vmatpush1.xpose.msra.mxu0 0.0
    %853 = vmatprep.subr.mxu0 0.0
    %854 = vmatpush1.xpose.msra.mxu0 0.0
    %855 = vmatprep.subr.mxu0 0.0
    %856 = vmatpush1.xpose.msra.mxu0 0.0
    %857 = vmatprep.subr.mxu0 0.0
    %858 = vmatpush1.xpose.msra.mxu0 0.0
    %859 = vmatprep.subr.mxu0 0.0
    %860 = vmatpush1.xpose.msra.mxu0 0.0
    %861 = vmatprep.subr.mxu0 0.0
    %862 = vmatpush1.xpose.msra.mxu0 0.0
    %863 = vmatprep.subr.mxu0 0.0
    %864 = vmatpush1.xpose.msra.mxu0 0.0
    %865 = vmatprep.subr.mxu0 0.0
    %866 = vmatpush1.xpose.msra.mxu0 0.0
    %867 = vmatprep.subr.mxu0 0.0
    %868 = vmatpush1.xpose.msra.mxu0 0.0
    %869 = vmatprep.subr.mxu0 0.0
    %870 = vmatpush1.xpose.msra.mxu0 0.0
    %871 = vmatprep.subr.mxu0 0.0
    %872 = vmatpush1.xpose.msra.mxu0 0.0
    %873 = vmatprep.subr.mxu0 0.0
    %874 = vmatpush1.xpose.msra.mxu0 0.0
    %875 = vmatprep.subr.mxu0 0.0
    %876 = vmatpush1.xpose.msra.mxu0 0.0
    %877 = vmatprep.subr.mxu0 0.0
    %878 = vmatpush1.xpose.msra.mxu0 0.0
    %879 = vmatprep.subr.mxu0 0.0
    %880 = vmatpush1.xpose.msra.mxu0 0.0
    %881 = vmatprep.subr.mxu0 0.0
    %882 = vmatpush1.xpose.msra.mxu0 0.0
    %883 = vmatprep.subr.mxu0 0.0
    %884 = vmatpush1.xpose.msra.mxu0 0.0
    %885 = vmatprep.subr.mxu0 0.0
    %886 = vmatpush1.xpose.msra.mxu0 0.0
    %887 = vmatprep.subr.mxu0 0.0
    %888 = vmatpush1.xpose.msra.mxu0 0.0
    %889 = vmatprep.subr.mxu0 0.0
    %890 = vmatpush1.xpose.msra.mxu0 0.0
    %891 = vmatprep.subr.mxu0 0.0
    %892 = vmatpush1.xpose.msra.mxu0 0.0
    %893 = vmatprep.mubr.f32.mxu0 0.0
    %894 = vmatmul.mubr.f32.gmra.mrb[0].mxu0 %v825
    %v895 = vpop.f32.mrb[0].mxu0
    %v896 = vadd.f32 0.0, %v895
    %v897 = vpop.f32.mrb[0].mxu0
    %898 = vdwg.mxu0
    %899 = vrot.lane.b32.xlu0 %v159, 80
    %v900 = vpop.permute.xlu0 %899
    %901 = vrot.lane.b32.xlu0 %v159, 72
    %v902 = vpop.permute.xlu0 %901
    %v903 = vsel %vm165, %v900, 0
    %v905 = vsel %vm165, %v902, 0
    %907 = vmatprep.subr.mxu0 0.0
    %908 = vmatpush1.xpose.msra.mxu0 %v905
    %909 = vmatprep.subr.mxu0 0.0
    %910 = vmatpush1.xpose.msra.mxu0 0.0
    %911 = vmatprep.subr.mxu0 0.0
    %912 = vmatpush1.xpose.msra.mxu0 0.0
    %913 = vmatprep.subr.mxu0 0.0
    %914 = vmatpush1.xpose.msra.mxu0 0.0
    %915 = vmatprep.subr.mxu0 0.0
    %916 = vmatpush1.xpose.msra.mxu0 0.0
    %917 = vmatprep.subr.mxu0 0.0
    %918 = vmatpush1.xpose.msra.mxu0 0.0
    %919 = vmatprep.subr.mxu0 0.0
    %920 = vmatpush1.xpose.msra.mxu0 0.0
    %921 = vmatprep.subr.mxu0 0.0
    %922 = vmatpush1.xpose.msra.mxu0 0.0
    %923 = vmatprep.subr.mxu0 0.0
    %924 = vmatpush1.xpose.msra.mxu0 0.0
    %925 = vmatprep.subr.mxu0 0.0
    %926 = vmatpush1.xpose.msra.mxu0 0.0
    %927 = vmatprep.subr.mxu0 0.0
    %928 = vmatpush1.xpose.msra.mxu0 0.0
    %929 = vmatprep.subr.mxu0 0.0
    %930 = vmatpush1.xpose.msra.mxu0 0.0
    %931 = vmatprep.subr.mxu0 0.0
    %932 = vmatpush1.xpose.msra.mxu0 0.0
    %933 = vmatprep.subr.mxu0 0.0
    %934 = vmatpush1.xpose.msra.mxu0 0.0
    %935 = vmatprep.subr.mxu0 0.0
    %936 = vmatpush1.xpose.msra.mxu0 0.0
    %937 = vmatprep.subr.mxu0 0.0
    %938 = vmatpush1.xpose.msra.mxu0 0.0
    %939 = vmatprep.subr.mxu0 0.0
    %940 = vmatpush1.xpose.msra.mxu0 0.0
    %941 = vmatprep.subr.mxu0 0.0
    %942 = vmatpush1.xpose.msra.mxu0 0.0
    %943 = vmatprep.subr.mxu0 0.0
    %944 = vmatpush1.xpose.msra.mxu0 0.0
    %945 = vmatprep.subr.mxu0 0.0
    %946 = vmatpush1.xpose.msra.mxu0 0.0
    %947 = vmatprep.subr.mxu0 0.0
    %948 = vmatpush1.xpose.msra.mxu0 0.0
    %949 = vmatprep.subr.mxu0 0.0
    %950 = vmatpush1.xpose.msra.mxu0 0.0
    %951 = vmatprep.subr.mxu0 0.0
    %952 = vmatpush1.xpose.msra.mxu0 0.0
    %953 = vmatprep.subr.mxu0 0.0
    %954 = vmatpush1.xpose.msra.mxu0 0.0
    %955 = vmatprep.subr.mxu0 0.0
    %956 = vmatpush1.xpose.msra.mxu0 0.0
    %957 = vmatprep.subr.mxu0 0.0
    %958 = vmatpush1.xpose.msra.mxu0 0.0
    %959 = vmatprep.subr.mxu0 0.0
    %960 = vmatpush1.xpose.msra.mxu0 0.0
    %961 = vmatprep.subr.mxu0 0.0
    %962 = vmatpush1.xpose.msra.mxu0 0.0
    %963 = vmatprep.subr.mxu0 0.0
    %964 = vmatpush1.xpose.msra.mxu0 0.0
    %965 = vmatprep.subr.mxu0 0.0
    %966 = vmatpush1.xpose.msra.mxu0 0.0
    %967 = vmatprep.subr.mxu0 0.0
    %968 = vmatpush1.xpose.msra.mxu0 0.0
    %969 = vmatprep.subr.mxu0 0.0
    %970 = vmatpush1.xpose.msra.mxu0 0.0
    %971 = vmatprep.mubr.f32.mxu0 0.0
    %972 = vmatmul.mubr.f32.gmra.mrb[0].mxu0 %v903
    %v973 = vpop.f32.mrb[0].mxu0
    %v974 = vadd.f32 0.0, %v973
    %v975 = vpop.f32.mrb[0].mxu0
    %976 = vdwg.mxu0
    %v977 = vsel %vm165, %v896, -inf
    %978 = vmax.xlane.f32.xlu0 %v977
    %v979 = vpop.xlane.xlu0 %978
    %v980 = vsel %vm165, %v974, -inf
    %981 = vmax.xlane.f32.xlu0 %v980
    %v982 = vpop.xlane.xlu0 %981
    %v983 = vsub.f32 %v896, %v979
    %v984 = vsub.f32 %v974, %v982
    %v985 = vmul.f32 %v983, 1.442695
    %v986 = vpow.pop %v985
    %v987 = vmul.f32 %v984, 1.442695
    %v988 = vpow.pop %v987
    %v989 = vsel %vm165, %v986, 0.0
    %990 = vadd.xlane.f32.xlu0 %v989
    %v991 = vpop.xlane.xlu0 %990
    %v992 = vsel %vm165, %v988, 0.0
    %993 = vadd.xlane.f32.xlu0 %v992
    %v994 = vpop.xlane.xlu0 %993
    %v995 = vrcp.pop %v991
    %v996 = vrcp.pop %v994
    %v997 = vmul.f32 %v986, %v995
    %v998 = vmul.f32 %v988, %v996
    %999 = vrot.lane.b32.xlu0 %v156, 64
    %v1000 = vpop.permute.xlu0 %999
    %v1003 = vsel %vm165, %v997, 0
    %1005 = vmatprep.subr.mxu0 0.0
    %1006 = vmatpush1.msra.mxu0 %v1000
    %1007 = vmatprep.subr.mxu0 0.0
    %1008 = vmatpush1.msra.mxu0 0.0
    %1009 = vmatprep.subr.mxu0 0.0
    %1010 = vmatpush1.msra.mxu0 0.0
    %1011 = vmatprep.subr.mxu0 0.0
    %1012 = vmatpush1.msra.mxu0 0.0
    %1013 = vmatprep.subr.mxu0 0.0
    %1014 = vmatpush1.msra.mxu0 0.0
    %1015 = vmatprep.subr.mxu0 0.0
    %1016 = vmatpush1.msra.mxu0 0.0
    %1017 = vmatprep.subr.mxu0 0.0
    %1018 = vmatpush1.msra.mxu0 0.0
    %1019 = vmatprep.subr.mxu0 0.0
    %1020 = vmatpush1.msra.mxu0 0.0
    %1021 = vmatprep.subr.mxu0 0.0
    %1022 = vmatpush1.msra.mxu0 0.0
    %1023 = vmatprep.subr.mxu0 0.0
    %1024 = vmatpush1.msra.mxu0 0.0
    %1025 = vmatprep.subr.mxu0 0.0
    %1026 = vmatpush1.msra.mxu0 0.0
    %1027 = vmatprep.subr.mxu0 0.0
    %1028 = vmatpush1.msra.mxu0 0.0
    %1029 = vmatprep.subr.mxu0 0.0
    %1030 = vmatpush1.msra.mxu0 0.0
    %1031 = vmatprep.subr.mxu0 0.0
    %1032 = vmatpush1.msra.mxu0 0.0
    %1033 = vmatprep.subr.mxu0 0.0
    %1034 = vmatpush1.msra.mxu0 0.0
    %1035 = vmatprep.subr.mxu0 0.0
    %1036 = vmatpush1.msra.mxu0 0.0
    %1037 = vmatprep.subr.mxu0 0.0
    %1038 = vmatpush1.msra.mxu0 0.0
    %1039 = vmatprep.subr.mxu0 0.0
    %1040 = vmatpush1.msra.mxu0 0.0
    %1041 = vmatprep.subr.mxu0 0.0
    %1042 = vmatpush1.msra.mxu0 0.0
    %1043 = vmatprep.subr.mxu0 0.0
    %1044 = vmatpush1.msra.mxu0 0.0
    %1045 = vmatprep.subr.mxu0 0.0
    %1046 = vmatpush1.msra.mxu0 0.0
    %1047 = vmatprep.subr.mxu0 0.0
    %1048 = vmatpush1.msra.mxu0 0.0
    %1049 = vmatprep.subr.mxu0 0.0
    %1050 = vmatpush1.msra.mxu0 0.0
    %1051 = vmatprep.subr.mxu0 0.0
    %1052 = vmatpush1.msra.mxu0 0.0
    %1053 = vmatprep.subr.mxu0 0.0
    %1054 = vmatpush1.msra.mxu0 0.0
    %1055 = vmatprep.subr.mxu0 0.0
    %1056 = vmatpush1.msra.mxu0 0.0
    %1057 = vmatprep.subr.mxu0 0.0
    %1058 = vmatpush1.msra.mxu0 0.0
    %1059 = vmatprep.subr.mxu0 0.0
    %1060 = vmatpush1.msra.mxu0 0.0
    %1061 = vmatprep.subr.mxu0 0.0
    %1062 = vmatpush1.msra.mxu0 0.0
    %1063 = vmatprep.subr.mxu0 0.0
    %1064 = vmatpush1.msra.mxu0 0.0
    %1065 = vmatprep.subr.mxu0 0.0
    %1066 = vmatpush1.msra.mxu0 0.0
    %1067 = vmatprep.subr.mxu0 0.0
    %1068 = vmatpush1.msra.mxu0 0.0
    %1069 = vmatprep.mubr.f32.mxu0 0.0
    %1070 = vmatmul.mubr.f32.gmra.mrb[0].mxu0 %v1003
    %v1071 = vpop.f32.mrb[0].mxu0
    %v1072 = vadd.f32 0.0, %v1071
    %v1073 = vpop.f32.mrb[0].mxu0
    %1074 = vdwg.mxu0
    %1075 = vrot.lane.b32.xlu0 %v159, 64
    %v1076 = vpop.permute.xlu0 %1075
    %v1079 = vsel %vm165, %v998, 0
    %1081 = vmatprep.subr.mxu0 0.0
    %1082 = vmatpush1.msra.mxu0 %v1076
    %1083 = vmatprep.subr.mxu0 0.0
    %1084 = vmatpush1.msra.mxu0 0.0
    %1085 = vmatprep.subr.mxu0 0.0
    %1086 = vmatpush1.msra.mxu0 0.0
    %1087 = vmatprep.subr.mxu0 0.0
    %1088 = vmatpush1.msra.mxu0 0.0
    %1089 = vmatprep.subr.mxu0 0.0
    %1090 = vmatpush1.msra.mxu0 0.0
    %1091 = vmatprep.subr.mxu0 0.0
    %1092 = vmatpush1.msra.mxu0 0.0
    %1093 = vmatprep.subr.mxu0 0.0
    %1094 = vmatpush1.msra.mxu0 0.0
    %1095 = vmatprep.subr.mxu0 0.0
    %1096 = vmatpush1.msra.mxu0 0.0
    %1097 = vmatprep.subr.mxu0 0.0
    %1098 = vmatpush1.msra.mxu0 0.0
    %1099 = vmatprep.subr.mxu0 0.0
    %1100 = vmatpush1.msra.mxu0 0.0
    %1101 = vmatprep.subr.mxu0 0.0
    %1102 = vmatpush1.msra.mxu0 0.0
    %1103 = vmatprep.subr.mxu0 0.0
    %1104 = vmatpush1.msra.mxu0 0.0
    %1105 = vmatprep.subr.mxu0 0.0
    %1106 = vmatpush1.msra.mxu0 0.0
    %1107 = vmatprep.subr.mxu0 0.0
    %1108 = vmatpush1.msra.mxu0 0.0
    %1109 = vmatprep.subr.mxu0 0.0
    %1110 = vmatpush1.msra.mxu0 0.0
    %1111 = vmatprep.subr.mxu0 0.0
    %1112 = vmatpush1.msra.mxu0 0.0
    %1113 = vmatprep.subr.mxu0 0.0
    %1114 = vmatpush1.msra.mxu0 0.0
    %1115 = vmatprep.subr.mxu0 0.0
    %1116 = vmatpush1.msra.mxu0 0.0
    %1117 = vmatprep.subr.mxu0 0.0
    %1118 = vmatpush1.msra.mxu0 0.0
    %1119 = vmatprep.subr.mxu0 0.0
    %1120 = vmatpush1.msra.mxu0 0.0
    %1121 = vmatprep.subr.mxu0 0.0
    %1122 = vmatpush1.msra.mxu0 0.0
    %1123 = vmatprep.subr.mxu0 0.0
    %1124 = vmatpush1.msra.mxu0 0.0
    %1125 = vmatprep.subr.mxu0 0.0
    %1126 = vmatpush1.msra.mxu0 0.0
    %1127 = vmatprep.subr.mxu0 0.0
    %1128 = vmatpush1.msra.mxu0 0.0
    %1129 = vmatprep.subr.mxu0 0.0
    %1130 = vmatpush1.msra.mxu0 0.0
    %1131 = vmatprep.subr.mxu0 0.0
    %1132 = vmatpush1.msra.mxu0 0.0
    %1133 = vmatprep.subr.mxu0 0.0
    %1134 = vmatpush1.msra.mxu0 0.0
    %1135 = vmatprep.subr.mxu0 0.0
    %1136 = vmatpush1.msra.mxu0 0.0
    %1137 = vmatprep.subr.mxu0 0.0
    %1138 = vmatpush1.msra.mxu0 0.0
    %1139 = vmatprep.subr.mxu0 0.0
    %1140 = vmatpush1.msra.mxu0 0.0
    %1141 = vmatprep.subr.mxu0 0.0
    %1142 = vmatpush1.msra.mxu0 0.0
    %1143 = vmatprep.subr.mxu0 0.0
    %1144 = vmatpush1.msra.mxu0 0.0
    %1145 = vmatprep.mubr.f32.mxu0 0.0
    %1146 = vmatmul.mubr.f32.gmra.mrb[0].mxu0 %v1079
    %v1147 = vpop.f32.mrb[0].mxu0
    %v1148 = vadd.f32 0.0, %v1147
    %v1149 = vpop.f32.mrb[0].mxu0
    %1150 = vdwg.mxu0
    %1151 = vrot.lane.b32.xlu0 %v156, 56
    %v1152 = vpop.permute.xlu0 %1151
    %1153 = vrot.lane.b32.xlu0 %v156, 48
    %v1154 = vpop.permute.xlu0 %1153
    %v1155 = vsel %vm165, %v1152, 0
    %v1157 = vsel %vm165, %v1154, 0
    %1159 = vmatprep.subr.mxu0 0.0
    %1160 = vmatpush1.xpose.msra.mxu0 %v1157
    %1161 = vmatprep.subr.mxu0 0.0
    %1162 = vmatpush1.xpose.msra.mxu0 0.0
    %1163 = vmatprep.subr.mxu0 0.0
    %1164 = vmatpush1.xpose.msra.mxu0 0.0
    %1165 = vmatprep.subr.mxu0 0.0
    %1166 = vmatpush1.xpose.msra.mxu0 0.0
    %1167 = vmatprep.subr.mxu0 0.0
    %1168 = vmatpush1.xpose.msra.mxu0 0.0
    %1169 = vmatprep.subr.mxu0 0.0
    %1170 = vmatpush1.xpose.msra.mxu0 0.0
    %1171 = vmatprep.subr.mxu0 0.0
    %1172 = vmatpush1.xpose.msra.mxu0 0.0
    %1173 = vmatprep.subr.mxu0 0.0
    %1174 = vmatpush1.xpose.msra.mxu0 0.0
    %1175 = vmatprep.subr.mxu0 0.0
    %1176 = vmatpush1.xpose.msra.mxu0 0.0
    %1177 = vmatprep.subr.mxu0 0.0
    %1178 = vmatpush1.xpose.msra.mxu0 0.0
    %1179 = vmatprep.subr.mxu0 0.0
    %1180 = vmatpush1.xpose.msra.mxu0 0.0
    %1181 = vmatprep.subr.mxu0 0.0
    %1182 = vmatpush1.xpose.msra.mxu0 0.0
    %1183 = vmatprep.subr.mxu0 0.0
    %1184 = vmatpush1.xpose.msra.mxu0 0.0
    %1185 = vmatprep.subr.mxu0 0.0
    %1186 = vmatpush1.xpose.msra.mxu0 0.0
    %1187 = vmatprep.subr.mxu0 0.0
    %1188 = vmatpush1.xpose.msra.mxu0 0.0
    %1189 = vmatprep.subr.mxu0 0.0
    %1190 = vmatpush1.xpose.msra.mxu0 0.0
    %1191 = vmatprep.subr.mxu0 0.0
    %1192 = vmatpush1.xpose.msra.mxu0 0.0
    %1193 = vmatprep.subr.mxu0 0.0
    %1194 = vmatpush1.xpose.msra.mxu0 0.0
    %1195 = vmatprep.subr.mxu0 0.0
    %1196 = vmatpush1.xpose.msra.mxu0 0.0
    %1197 = vmatprep.subr.mxu0 0.0
    %1198 = vmatpush1.xpose.msra.mxu0 0.0
    %1199 = vmatprep.subr.mxu0 0.0
    %1200 = vmatpush1.xpose.msra.mxu0 0.0
    %1201 = vmatprep.subr.mxu0 0.0
    %1202 = vmatpush1.xpose.msra.mxu0 0.0
    %1203 = vmatprep.subr.mxu0 0.0
    %1204 = vmatpush1.xpose.msra.mxu0 0.0
    %1205 = vmatprep.subr.mxu0 0.0
    %1206 = vmatpush1.xpose.msra.mxu0 0.0
    %1207 = vmatprep.subr.mxu0 0.0
    %1208 = vmatpush1.xpose.msra.mxu0 0.0
    %1209 = vmatprep.subr.mxu0 0.0
    %1210 = vmatpush1.xpose.msra.mxu0 0.0
    %1211 = vmatprep.subr.mxu0 0.0
    %1212 = vmatpush1.xpose.msra.mxu0 0.0
    %1213 = vmatprep.subr.mxu0 0.0
    %1214 = vmatpush1.xpose.msra.mxu0 0.0
    %1215 = vmatprep.subr.mxu0 0.0
    %1216 = vmatpush1.xpose.msra.mxu0 0.0
    %1217 = vmatprep.subr.mxu0 0.0
    %1218 = vmatpush1.xpose.msra.mxu0 0.0
    %1219 = vmatprep.subr.mxu0 0.0
    %1220 = vmatpush1.xpose.msra.mxu0 0.0
    %1221 = vmatprep.subr.mxu0 0.0
    %1222 = vmatpush1.xpose.msra.mxu0 0.0
    %1223 = vmatprep.mubr.f32.mxu0 0.0
    %1224 = vmatmul.mubr.f32.gmra.mrb[0].mxu0 %v1155
    %v1225 = vpop.f32.mrb[0].mxu0
    %v1226 = vadd.f32 0.0, %v1225
    %v1227 = vpop.f32.mrb[0].mxu0
    %1228 = vdwg.mxu0
    %1229 = vrot.lane.b32.xlu0 %v159, 56
    %v1230 = vpop.permute.xlu0 %1229
    %1231 = vrot.lane.b32.xlu0 %v159, 48
    %v1232 = vpop.permute.xlu0 %1231
    %v1233 = vsel %vm165, %v1230, 0
    %v1235 = vsel %vm165, %v1232, 0
    %1237 = vmatprep.subr.mxu0 0.0
    %1238 = vmatpush1.xpose.msra.mxu0 %v1235
    %1239 = vmatprep.subr.mxu0 0.0
    %1240 = vmatpush1.xpose.msra.mxu0 0.0
    %1241 = vmatprep.subr.mxu0 0.0
    %1242 = vmatpush1.xpose.msra.mxu0 0.0
    %1243 = vmatprep.subr.mxu0 0.0
    %1244 = vmatpush1.xpose.msra.mxu0 0.0
    %1245 = vmatprep.subr.mxu0 0.0
    %1246 = vmatpush1.xpose.msra.mxu0 0.0
    %1247 = vmatprep.subr.mxu0 0.0
    %1248 = vmatpush1.xpose.msra.mxu0 0.0
    %1249 = vmatprep.subr.mxu0 0.0
    %1250 = vmatpush1.xpose.msra.mxu0 0.0
    %1251 = vmatprep.subr.mxu0 0.0
    %1252 = vmatpush1.xpose.msra.mxu0 0.0
    %1253 = vmatprep.subr.mxu0 0.0
    %1254 = vmatpush1.xpose.msra.mxu0 0.0
    %1255 = vmatprep.subr.mxu0 0.0
    %1256 = vmatpush1.xpose.msra.mxu0 0.0
    %1257 = vmatprep.subr.mxu0 0.0
    %1258 = vmatpush1.xpose.msra.mxu0 0.0
    %1259 = vmatprep.subr.mxu0 0.0
    %1260 = vmatpush1.xpose.msra.mxu0 0.0
    %1261 = vmatprep.subr.mxu0 0.0
    %1262 = vmatpush1.xpose.msra.mxu0 0.0
    %1263 = vmatprep.subr.mxu0 0.0
    %1264 = vmatpush1.xpose.msra.mxu0 0.0
    %1265 = vmatprep.subr.mxu0 0.0
    %1266 = vmatpush1.xpose.msra.mxu0 0.0
    %1267 = vmatprep.subr.mxu0 0.0
    %1268 = vmatpush1.xpose.msra.mxu0 0.0
    %1269 = vmatprep.subr.mxu0 0.0
    %1270 = vmatpush1.xpose.msra.mxu0 0.0
    %1271 = vmatprep.subr.mxu0 0.0
    %1272 = vmatpush1.xpose.msra.mxu0 0.0
    %1273 = vmatprep.subr.mxu0 0.0
    %1274 = vmatpush1.xpose.msra.mxu0 0.0
    %1275 = vmatprep.subr.mxu0 0.0
    %1276 = vmatpush1.xpose.msra.mxu0 0.0
    %1277 = vmatprep.subr.mxu0 0.0
    %1278 = vmatpush1.xpose.msra.mxu0 0.0
    %1279 = vmatprep.subr.mxu0 0.0
    %1280 = vmatpush1.xpose.msra.mxu0 0.0
    %1281 = vmatprep.subr.mxu0 0.0
    %1282 = vmatpush1.xpose.msra.mxu0 0.0
    %1283 = vmatprep.subr.mxu0 0.0
    %1284 = vmatpush1.xpose.msra.mxu0 0.0
    %1285 = vmatprep.subr.mxu0 0.0
    %1286 = vmatpush1.xpose.msra.mxu0 0.0
    %1287 = vmatprep.subr.mxu0 0.0
    %1288 = vmatpush1.xpose.msra.mxu0 0.0
    %1289 = vmatprep.subr.mxu0 0.0
    %1290 = vmatpush1.xpose.msra.mxu0 0.0
    %1291 = vmatprep.subr.mxu0 0.0
    %1292 = vmatpush1.xpose.msra.mxu0 0.0
    %1293 = vmatprep.subr.mxu0 0.0
    %1294 = vmatpush1.xpose.msra.mxu0 0.0
    %1295 = vmatprep.subr.mxu0 0.0
    %1296 = vmatpush1.xpose.msra.mxu0 0.0
    %1297 = vmatprep.subr.mxu0 0.0
    %1298 = vmatpush1.xpose.msra.mxu0 0.0
    %1299 = vmatprep.subr.mxu0 0.0
    %1300 = vmatpush1.xpose.msra.mxu0 0.0
    %1301 = vmatprep.mubr.f32.mxu0 0.0
    %1302 = vmatmul.mubr.f32.gmra.mrb[0].mxu0 %v1233
    %v1303 = vpop.f32.mrb[0].mxu0
    %v1304 = vadd.f32 0.0, %v1303
    %v1305 = vpop.f32.mrb[0].mxu0
    %1306 = vdwg.mxu0
    %v1307 = vsel %vm165, %v1226, -inf
    %1308 = vmax.xlane.f32.xlu0 %v1307
    %v1309 = vpop.xlane.xlu0 %1308
    %v1310 = vsel %vm165, %v1304, -inf
    %1311 = vmax.xlane.f32.xlu0 %v1310
    %v1312 = vpop.xlane.xlu0 %1311
    %v1313 = vsub.f32 %v1226, %v1309
    %v1314 = vsub.f32 %v1304, %v1312
    %v1315 = vmul.f32 %v1313, 1.442695
    %v1316 = vpow.pop %v1315
    %v1317 = vmul.f32 %v1314, 1.442695
    %v1318 = vpow.pop %v1317
    %v1319 = vsel %vm165, %v1316, 0.0
    %1320 = vadd.xlane.f32.xlu0 %v1319
    %v1321 = vpop.xlane.xlu0 %1320
    %v1322 = vsel %vm165, %v1318, 0.0
    %1323 = vadd.xlane.f32.xlu0 %v1322
    %v1324 = vpop.xlane.xlu0 %1323
    %v1325 = vrcp.pop %v1321
    %v1326 = vrcp.pop %v1324
    %v1327 = vmul.f32 %v1316, %v1325
    %v1328 = vmul.f32 %v1318, %v1326
    %1329 = vrot.lane.b32.xlu0 %v156, 40
    %v1330 = vpop.permute.xlu0 %1329
    %v1333 = vsel %vm165, %v1327, 0
    %1335 = vmatprep.subr.mxu0 0.0
    %1336 = vmatpush1.msra.mxu0 %v1330
    %1337 = vmatprep.subr.mxu0 0.0
    %1338 = vmatpush1.msra.mxu0 0.0
    %1339 = vmatprep.subr.mxu0 0.0
    %1340 = vmatpush1.msra.mxu0 0.0
    %1341 = vmatprep.subr.mxu0 0.0
    %1342 = vmatpush1.msra.mxu0 0.0
    %1343 = vmatprep.subr.mxu0 0.0
    %1344 = vmatpush1.msra.mxu0 0.0
    %1345 = vmatprep.subr.mxu0 0.0
    %1346 = vmatpush1.msra.mxu0 0.0
    %1347 = vmatprep.subr.mxu0 0.0
    %1348 = vmatpush1.msra.mxu0 0.0
    %1349 = vmatprep.subr.mxu0 0.0
    %1350 = vmatpush1.msra.mxu0 0.0
    %1351 = vmatprep.subr.mxu0 0.0
    %1352 = vmatpush1.msra.mxu0 0.0
    %1353 = vmatprep.subr.mxu0 0.0
    %1354 = vmatpush1.msra.mxu0 0.0
    %1355 = vmatprep.subr.mxu0 0.0
    %1356 = vmatpush1.msra.mxu0 0.0
    %1357 = vmatprep.subr.mxu0 0.0
    %1358 = vmatpush1.msra.mxu0 0.0
    %1359 = vmatprep.subr.mxu0 0.0
    %1360 = vmatpush1.msra.mxu0 0.0
    %1361 = vmatprep.subr.mxu0 0.0
    %1362 = vmatpush1.msra.mxu0 0.0
    %1363 = vmatprep.subr.mxu0 0.0
    %1364 = vmatpush1.msra.mxu0 0.0
    %1365 = vmatprep.subr.mxu0 0.0
    %1366 = vmatpush1.msra.mxu0 0.0
    %1367 = vmatprep.subr.mxu0 0.0
    %1368 = vmatpush1.msra.mxu0 0.0
    %1369 = vmatprep.subr.mxu0 0.0
    %1370 = vmatpush1.msra.mxu0 0.0
    %1371 = vmatprep.subr.mxu0 0.0
    %1372 = vmatpush1.msra.mxu0 0.0
    %1373 = vmatprep.subr.mxu0 0.0
    %1374 = vmatpush1.msra.mxu0 0.0
    %1375 = vmatprep.subr.mxu0 0.0
    %1376 = vmatpush1.msra.mxu0 0.0
    %1377 = vmatprep.subr.mxu0 0.0
    %1378 = vmatpush1.msra.mxu0 0.0
    %1379 = vmatprep.subr.mxu0 0.0
    %1380 = vmatpush1.msra.mxu0 0.0
    %1381 = vmatprep.subr.mxu0 0.0
    %1382 = vmatpush1.msra.mxu0 0.0
    %1383 = vmatprep.subr.mxu0 0.0
    %1384 = vmatpush1.msra.mxu0 0.0
    %1385 = vmatprep.subr.mxu0 0.0
    %1386 = vmatpush1.msra.mxu0 0.0
    %1387 = vmatprep.subr.mxu0 0.0
    %1388 = vmatpush1.msra.mxu0 0.0
    %1389 = vmatprep.subr.mxu0 0.0
    %1390 = vmatpush1.msra.mxu0 0.0
    %1391 = vmatprep.subr.mxu0 0.0
    %1392 = vmatpush1.msra.mxu0 0.0
    %1393 = vmatprep.subr.mxu0 0.0
    %1394 = vmatpush1.msra.mxu0 0.0
    %1395 = vmatprep.subr.mxu0 0.0
    %1396 = vmatpush1.msra.mxu0 0.0
    %1397 = vmatprep.subr.mxu0 0.0
    %1398 = vmatpush1.msra.mxu0 0.0
    %1399 = vmatprep.mubr.f32.mxu0 0.0
    %1400 = vmatmul.mubr.f32.gmra.mrb[0].mxu0 %v1333
    %v1401 = vpop.f32.mrb[0].mxu0
    %v1402 = vadd.f32 0.0, %v1401
    %v1403 = vpop.f32.mrb[0].mxu0
    %1404 = vdwg.mxu0
    %1405 = vrot.lane.b32.xlu0 %v159, 40
    %v1406 = vpop.permute.xlu0 %1405
    %v1409 = vsel %vm165, %v1328, 0
    %1411 = vmatprep.subr.mxu0 0.0
    %1412 = vmatpush1.msra.mxu0 %v1406
    %1413 = vmatprep.subr.mxu0 0.0
    %1414 = vmatpush1.msra.mxu0 0.0
    %1415 = vmatprep.subr.mxu0 0.0
    %1416 = vmatpush1.msra.mxu0 0.0
    %1417 = vmatprep.subr.mxu0 0.0
    %1418 = vmatpush1.msra.mxu0 0.0
    %1419 = vmatprep.subr.mxu0 0.0
    %1420 = vmatpush1.msra.mxu0 0.0
    %1421 = vmatprep.subr.mxu0 0.0
    %1422 = vmatpush1.msra.mxu0 0.0
    %1423 = vmatprep.subr.mxu0 0.0
    %1424 = vmatpush1.msra.mxu0 0.0
    %1425 = vmatprep.subr.mxu0 0.0
    %1426 = vmatpush1.msra.mxu0 0.0
    %1427 = vmatprep.subr.mxu0 0.0
    %1428 = vmatpush1.msra.mxu0 0.0
    %1429 = vmatprep.subr.mxu0 0.0
    %1430 = vmatpush1.msra.mxu0 0.0
    %1431 = vmatprep.subr.mxu0 0.0
    %1432 = vmatpush1.msra.mxu0 0.0
    %1433 = vmatprep.subr.mxu0 0.0
    %1434 = vmatpush1.msra.mxu0 0.0
    %1435 = vmatprep.subr.mxu0 0.0
    %1436 = vmatpush1.msra.mxu0 0.0
    %1437 = vmatprep.subr.mxu0 0.0
    %1438 = vmatpush1.msra.mxu0 0.0
    %1439 = vmatprep.subr.mxu0 0.0
    %1440 = vmatpush1.msra.mxu0 0.0
    %1441 = vmatprep.subr.mxu0 0.0
    %1442 = vmatpush1.msra.mxu0 0.0
    %1443 = vmatprep.subr.mxu0 0.0
    %1444 = vmatpush1.msra.mxu0 0.0
    %1445 = vmatprep.subr.mxu0 0.0
    %1446 = vmatpush1.msra.mxu0 0.0
    %1447 = vmatprep.subr.mxu0 0.0
    %1448 = vmatpush1.msra.mxu0 0.0
    %1449 = vmatprep.subr.mxu0 0.0
    %1450 = vmatpush1.msra.mxu0 0.0
    %1451 = vmatprep.subr.mxu0 0.0
    %1452 = vmatpush1.msra.mxu0 0.0
    %1453 = vmatprep.subr.mxu0 0.0
    %1454 = vmatpush1.msra.mxu0 0.0
    %1455 = vmatprep.subr.mxu0 0.0
    %1456 = vmatpush1.msra.mxu0 0.0
    %1457 = vmatprep.subr.mxu0 0.0
    %1458 = vmatpush1.msra.mxu0 0.0
    %1459 = vmatprep.subr.mxu0 0.0
    %1460 = vmatpush1.msra.mxu0 0.0
    %1461 = vmatprep.subr.mxu0 0.0
    %1462 = vmatpush1.msra.mxu0 0.0
    %1463 = vmatprep.subr.mxu0 0.0
    %1464 = vmatpush1.msra.mxu0 0.0
    %1465 = vmatprep.subr.mxu0 0.0
    %1466 = vmatpush1.msra.mxu0 0.0
    %1467 = vmatprep.subr.mxu0 0.0
    %1468 = vmatpush1.msra.mxu0 0.0
    %1469 = vmatprep.subr.mxu0 0.0
    %1470 = vmatpush1.msra.mxu0 0.0
    %1471 = vmatprep.subr.mxu0 0.0
    %1472 = vmatpush1.msra.mxu0 0.0
    %1473 = vmatprep.subr.mxu0 0.0
    %1474 = vmatpush1.msra.mxu0 0.0
    %1475 = vmatprep.mubr.f32.mxu0 0.0
    %1476 = vmatmul.mubr.f32.gmra.mrb[0].mxu0 %v1409
    %v1477 = vpop.f32.mrb[0].mxu0
    %v1478 = vadd.f32 0.0, %v1477
    %v1479 = vpop.f32.mrb[0].mxu0
    %1480 = vdwg.mxu0
    %1483 = vrot.lane.b32.xlu0 %v742, 8
    %v1484 = vpop.permute.xlu0 %1483
    %1485 = vrot.lane.b32.xlu0 %v818, 8
    %v1486 = vpop.permute.xlu0 %1485
    %1491 = vrot.lane.b32.xlu0 %v1072, 16
    %v1492 = vpop.permute.xlu0 %1491
    %1493 = vrot.lane.b32.xlu0 %v1148, 16
    %v1494 = vpop.permute.xlu0 %1493
    %1499 = vrot.lane.b32.xlu0 %v1402, 24
    %v1500 = vpop.permute.xlu0 %1499
    %1501 = vrot.lane.b32.xlu0 %v1478, 24
    %v1502 = vpop.permute.xlu0 %1501
    %v1505 = vsel %vm165, %v412, %v1484
    %v1506 = vsel %vm165, %v488, %v1486
    %vm1507 = vcmask 130048
    %v1508 = vsel %vm1507, %v1505, %v1492
    %v1509 = vsel %vm1507, %v1506, %v1494
    %vm1510 = vcmask 195584
    %v1511 = vsel %vm1510, %v1508, %v1500
    %v1512 = vsel %vm1510, %v1509, %v1502
    %v1513 = vpack.c.bf16 %v1512, %v1511
    %v1514 = vld [vmem:[%s5] sm:$0xf]
    %v1515 = vld [vmem:[%s5 + $0x4] sm:$0xf]
    %v1516 = vld [vmem:[%s5 + $0x8] sm:$0xf]
    %v1517 = vld [vmem:[%s5 + $0xc] sm:$0xf]
    %v1522 = vunpack.c.l.b16 %v1514
    %v1523 = vunpack.c.l.b16 %v1515
    %v1524 = vunpack.c.l.b16 %v1516
    %v1525 = vunpack.c.l.b16 %v1517
    %v1526 = vpack.c.b16 %v1523, %v1522
    %v1527 = vpack.c.b16 %v1525, %v1524
    %v1531 = vsel %vm50, %v1513, 0
    %1533 = vmatprep.subr.bf16.mxu0 0
    %1534 = vmatpush1.bf16.msra.mxu0 %v1526
    %1535 = vmatprep.subr.bf16.mxu0 0
    %1536 = vmatpush1.bf16.msra.mxu0 %v1527
    %1537 = vmatprep.subr.bf16.mxu0 0
    %1538 = vmatpush1.bf16.msra.mxu0 0
    %1539 = vmatprep.subr.bf16.mxu0 0
    %1540 = vmatpush1.bf16.msra.mxu0 0
    %1541 = vmatprep.subr.bf16.mxu0 0
    %1542 = vmatpush1.bf16.msra.mxu0 0
    %1543 = vmatprep.subr.bf16.mxu0 0
    %1544 = vmatpush1.bf16.msra.mxu0 0
    %1545 = vmatprep.subr.bf16.mxu0 0
    %1546 = vmatpush1.bf16.msra.mxu0 0
    %1547 = vmatprep.subr.bf16.mxu0 0
    %1548 = vmatpush1.bf16.msra.mxu0 0
    %1549 = vmatprep.subr.bf16.mxu0 0
    %1550 = vmatpush1.bf16.msra.mxu0 0
    %1551 = vmatprep.subr.bf16.mxu0 0
    %1552 = vmatpush1.bf16.msra.mxu0 0
    %1553 = vmatprep.subr.bf16.mxu0 0
    %1554 = vmatpush1.bf16.msra.mxu0 0
    %1555 = vmatprep.subr.bf16.mxu0 0
    %1556 = vmatpush1.bf16.msra.mxu0 0
    %1557 = vmatprep.subr.bf16.mxu0 0
    %1558 = vmatpush1.bf16.msra.mxu0 0
    %1559 = vmatprep.subr.bf16.mxu0 0
    %1560 = vmatpush1.bf16.msra.mxu0 0
    %1561 = vmatprep.subr.bf16.mxu0 0
    %1562 = vmatpush1.bf16.msra.mxu0 0
    %1563 = vmatprep.subr.bf16.mxu0 0
    %1564 = vmatpush1.bf16.msra.mxu0 0
    %1565 = vmatprep.mubr.bf16.mxu0 0
    %1566 = vmatmul.mubr.bf16.gmra.mrb[0].mxu0 %v1531
    %v1567 = vpop.f32.mrb[0].mxu0
    %v1568 = vadd.f32 0.0, %v1567
    %v1569 = vpop.f32.mrb[0].mxu0
    %v1570 = vpop.f32.mrb[0].mxu0
    %v1571 = vadd.f32 0.0, %v1570
    %v1572 = vpop.f32.mrb[0].mxu0
    %1573 = vdwg.mxu0
    %v1574 = vadd.f32 %v46, %v1568
    %v1575 = vadd.f32 %v47, %v1571
    %v1576 = vld [vmem:[%s6] sm:$0x1]
    %v1578 = vlaneseq
    %v1579 = vshrl.u32 %v1578, 7
    %v1580 = vsub.s32 0, %v1579
    %v1581 = vrot.slane %v1576, %v1580
    %v1583 = vadd.f32 %v1574, %v1581
    %v1584 = vadd.f32 %v1575, %v1581
    %v1585 = vld [vmem:[%s7] sm:$0x1]
    %v1586 = vld [vmem:[%s8] sm:$0x1]
    %v1587 = vsel %vm50, %v1583, 0.0
    %1588 = vadd.xlane.f32.xlu0 %v1587
    %v1589 = vpop.xlane.xlu0 %1588
    %v1590 = vsel %vm50, %v1584, 0.0
    %1591 = vadd.xlane.f32.xlu0 %v1590
    %v1592 = vpop.xlane.xlu0 %1591
    %v1593 = vmul.f32 %v1589, %v57
    %v1594 = vmul.f32 %v1592, %v57
    %v1595 = vsub.f32 %v1583, %v1593
    %v1596 = vsub.f32 %v1584, %v1594
    %v1597 = vmul.f32 %v1595, %v1595
    %v1598 = vmul.f32 %v1596, %v1596
    %v1599 = vsel %vm50, %v1597, 0.0
    %1600 = vadd.xlane.f32.xlu0 %v1599
    %v1601 = vpop.xlane.xlu0 %1600
    %v1602 = vsel %vm50, %v1598, 0.0
    %1603 = vadd.xlane.f32.xlu0 %v1602
    %v1604 = vpop.xlane.xlu0 %1603
    %v1605 = vmul.f32 %v1601, %v57
    %v1606 = vmul.f32 %v1604, %v57
    %v1607 = vadd.f32 %v1605, 1e-05
    %v1608 = vadd.f32 %v1606, 1e-05
    %v1609 = vrsqrt.pop %v1607
    %v1610 = vrsqrt.pop %v1608
    %v1611 = vmul.f32 %v1595, %v1609
    %v1612 = vmul.f32 %v1596, %v1610
    %v1614 = vlaneseq
    %v1615 = vshrl.u32 %v1614, 7
    %v1616 = vsub.s32 0, %v1615
    %v1617 = vrot.slane %v1585, %v1616
    %v1619 = vmul.f32 %v1611, %v1617
    %v1620 = vmul.f32 %v1612, %v1617
    %v1622 = vlaneseq
    %v1623 = vshrl.u32 %v1622, 7
    %v1624 = vsub.s32 0, %v1623
    %v1625 = vrot.slane %v1586, %v1624
    %v1627 = vadd.f32 %v1619, %v1625
    %v1628 = vadd.f32 %v1620, %v1625
    %v1629 = vpack.c.bf16 %v1628, %v1627
    %v1630 = vld [vmem:[%s9] sm:$0xf]
    %v1631 = vld [vmem:[%s9 + $0x4] sm:$0xf]
    %v1632 = vld [vmem:[%s9 + $0x8] sm:$0xf]
    %v1633 = vld [vmem:[%s9 + $0xc] sm:$0xf]
    %v1634 = vld [vmem:[%s10] sm:$0x1]
    %v1636 = vlaneseq
    %v1637 = vshrl.u32 %v1636, 7
    %v1638 = vsub.s32 0, %v1637
    %v1639 = vrot.slane %v1634, %v1638
    %v1645 = vunpack.c.l.b16 %v1630
    %v1646 = vunpack.c.l.b16 %v1631
    %v1647 = vunpack.c.l.b16 %v1632
    %v1648 = vunpack.c.l.b16 %v1633
    %v1649 = vpack.c.b16 %v1646, %v1645
    %v1650 = vpack.c.b16 %v1648, %v1647
    %v1654 = vsel %vm50, %v1629, 0
    %1656 = vmatprep.subr.bf16.mxu0 0
    %1657 = vmatpush1.bf16.msra.mxu0 %v1649
    %1658 = vmatprep.subr.bf16.mxu0 0
    %1659 = vmatpush1.bf16.msra.mxu0 %v1650
    %1660 = vmatprep.subr.bf16.mxu0 0
    %1661 = vmatpush1.bf16.msra.mxu0 0
    %1662 = vmatprep.subr.bf16.mxu0 0
    %1663 = vmatpush1.bf16.msra.mxu0 0
    %1664 = vmatprep.subr.bf16.mxu0 0
    %1665 = vmatpush1.bf16.msra.mxu0 0
    %1666 = vmatprep.subr.bf16.mxu0 0
    %1667 = vmatpush1.bf16.msra.mxu0 0
    %1668 = vmatprep.subr.bf16.mxu0 0
    %1669 = vmatpush1.bf16.msra.mxu0 0
    %1670 = vmatprep.subr.bf16.mxu0 0
    %1671 = vmatpush1.bf16.msra.mxu0 0
    %1672 = vmatprep.subr.bf16.mxu0 0
    %1673 = vmatpush1.bf16.msra.mxu0 0
    %1674 = vmatprep.subr.bf16.mxu0 0
    %1675 = vmatpush1.bf16.msra.mxu0 0
    %1676 = vmatprep.subr.bf16.mxu0 0
    %1677 = vmatpush1.bf16.msra.mxu0 0
    %1678 = vmatprep.subr.bf16.mxu0 0
    %1679 = vmatpush1.bf16.msra.mxu0 0
    %1680 = vmatprep.subr.bf16.mxu0 0
    %1681 = vmatpush1.bf16.msra.mxu0 0
    %1682 = vmatprep.subr.bf16.mxu0 0
    %1683 = vmatpush1.bf16.msra.mxu0 0
    %1684 = vmatprep.subr.bf16.mxu0 0
    %1685 = vmatpush1.bf16.msra.mxu0 0
    %1686 = vmatprep.subr.bf16.mxu0 0
    %1687 = vmatpush1.bf16.msra.mxu0 0
    %1688 = vmatprep.mubr.bf16.mxu0 0
    %1689 = vmatmul.mubr.bf16.gmra.mrb[0].mxu0 %v1654
    %v1690 = vpop.f32.mrb[0].mxu0
    %v1691 = vadd.f32 %v1639, %v1690
    %v1692 = vpop.f32.mrb[0].mxu0
    %v1693 = vpop.f32.mrb[0].mxu0
    %v1694 = vadd.f32 %v1639, %v1693
    %v1695 = vpop.f32.mrb[0].mxu0
    %1696 = vdwg.mxu0
    %v1697 = vmul.f32 %v1691, 0.5
    %v1698 = vmul.f32 %v1694, 0.5
    %v1699 = vmul.f32 %v1691, 0.70710677
    %v1700 = vmul.f32 %v1694, 0.70710677
    %v1701 = verf.f32.pop %v1699
    %v1702 = verf.f32.pop %v1700
    %v1703 = vadd.f32 %v1701, 1.0
    %v1704 = vadd.f32 %v1702, 1.0
    %v1705 = vmul.f32 %v1697, %v1703
    %v1706 = vmul.f32 %v1698, %v1704
    %v1707 = vpack.c.bf16 %v1706, %v1705
    %v1708 = vld [vmem:[%s11] sm:$0xf]
    %v1709 = vld [vmem:[%s11 + $0x4] sm:$0xf]
    %v1710 = vld [vmem:[%s11 + $0x8] sm:$0xf]
    %v1711 = vld [vmem:[%s11 + $0xc] sm:$0xf]
    %v1712 = vld [vmem:[%s11 + $0x10] sm:$0xf]
    %v1713 = vld [vmem:[%s11 + $0x14] sm:$0xf]
    %v1714 = vld [vmem:[%s11 + $0x18] sm:$0xf]
    %v1715 = vld [vmem:[%s11 + $0x1c] sm:$0xf]
    %v1716 = vld [vmem:[%s11 + $0x20] sm:$0xf]
    %v1717 = vld [vmem:[%s11 + $0x24] sm:$0xf]
    %v1718 = vld [vmem:[%s11 + $0x28] sm:$0xf]
    %v1719 = vld [vmem:[%s11 + $0x2c] sm:$0xf]
    %v1720 = vld [vmem:[%s11 + $0x30] sm:$0xf]
    %v1721 = vld [vmem:[%s11 + $0x34] sm:$0xf]
    %v1722 = vld [vmem:[%s11 + $0x38] sm:$0xf]
    %v1723 = vld [vmem:[%s11 + $0x3c] sm:$0xf]
    %v1724 = vld [vmem:[%s12] sm:$0x1]
    %v1726 = vlaneseq
    %v1727 = vshrl.u32 %v1726, 7
    %v1728 = vsub.s32 0, %v1727
    %v1729 = vrot.slane %v1724, %v1728
    %v1747 = vunpack.c.l.b16 %v1708
    %v1748 = vunpack.c.l.b16 %v1709
    %v1749 = vunpack.c.l.b16 %v1710
    %v1750 = vunpack.c.l.b16 %v1711
    %v1751 = vunpack.c.l.b16 %v1712
    %v1752 = vunpack.c.l.b16 %v1713
    %v1753 = vunpack.c.l.b16 %v1714
    %v1754 = vunpack.c.l.b16 %v1715
    %v1755 = vunpack.c.l.b16 %v1716
    %v1756 = vunpack.c.l.b16 %v1717
    %v1757 = vunpack.c.l.b16 %v1718
    %v1758 = vunpack.c.l.b16 %v1719
    %v1759 = vunpack.c.l.b16 %v1720
    %v1760 = vunpack.c.l.b16 %v1721
    %v1761 = vunpack.c.l.b16 %v1722
    %v1762 = vunpack.c.l.b16 %v1723
    %v1763 = vpack.c.b16 %v1748, %v1747
    %v1764 = vpack.c.b16 %v1750, %v1749
    %v1765 = vpack.c.b16 %v1752, %v1751
    %v1766 = vpack.c.b16 %v1754, %v1753
    %v1767 = vpack.c.b16 %v1756, %v1755
    %v1768 = vpack.c.b16 %v1758, %v1757
    %v1769 = vpack.c.b16 %v1760, %v1759
    %v1770 = vpack.c.b16 %v1762, %v1761
    %1779 = vmatprep.subr.bf16.mxu0 0
    %1780 = vmatpush1.bf16.msra.mxu0 %v1763
    %1781 = vmatprep.subr.bf16.mxu0 0
    %1782 = vmatpush1.bf16.msra.mxu0 %v1764
    %1783 = vmatprep.subr.bf16.mxu0 0
    %1784 = vmatpush1.bf16.msra.mxu0 %v1765
    %1785 = vmatprep.subr.bf16.mxu0 0
    %1786 = vmatpush1.bf16.msra.mxu0 %v1766
    %1787 = vmatprep.subr.bf16.mxu0 0
    %1788 = vmatpush1.bf16.msra.mxu0 %v1767
    %1789 = vmatprep.subr.bf16.mxu0 0
    %1790 = vmatpush1.bf16.msra.mxu0 %v1768
    %1791 = vmatprep.subr.bf16.mxu0 0
    %1792 = vmatpush1.bf16.msra.mxu0 %v1769
    %1793 = vmatprep.subr.bf16.mxu0 0
    %1794 = vmatpush1.bf16.msra.mxu0 %v1770
    %1795 = vmatprep.subr.bf16.mxu0 0
    %1796 = vmatpush1.bf16.msra.mxu0 0
    %1797 = vmatprep.subr.bf16.mxu0 0
    %1798 = vmatpush1.bf16.msra.mxu0 0
    %1799 = vmatprep.subr.bf16.mxu0 0
    %1800 = vmatpush1.bf16.msra.mxu0 0
    %1801 = vmatprep.subr.bf16.mxu0 0
    %1802 = vmatpush1.bf16.msra.mxu0 0
    %1803 = vmatprep.subr.bf16.mxu0 0
    %1804 = vmatpush1.bf16.msra.mxu0 0
    %1805 = vmatprep.subr.bf16.mxu0 0
    %1806 = vmatpush1.bf16.msra.mxu0 0
    %1807 = vmatprep.subr.bf16.mxu0 0
    %1808 = vmatpush1.bf16.msra.mxu0 0
    %1809 = vmatprep.subr.bf16.mxu0 0
    %1810 = vmatpush1.bf16.msra.mxu0 0
    %1811 = vmatprep.mubr.bf16.mxu0 0
    %1812 = vmatmul.mubr.bf16.gmra.mrb[0].mxu0 %v1707
    %v1813 = vpop.f32.mrb[0].mxu0
    %v1814 = vadd.f32 %v1729, %v1813
    %v1815 = vpop.f32.mrb[0].mxu0
    %v1816 = vpop.f32.mrb[0].mxu0
    %v1817 = vadd.f32 %v1729, %v1816
    %v1818 = vpop.f32.mrb[0].mxu0
    %1819 = vdwg.mxu0
    %v1820 = vadd.f32 %v1583, %v1814
    %v1821 = vadd.f32 %v1584, %v1817
    %1822 = vst.msk [vmem:[#allocation2] sm:$0xff] %vm50, %v1820
    %1823 = vst.msk [vmem:[#allocation2 + $0x8] sm:$0xff] %vm50, %v1821
    // Predicated region
    $region54: #{tpu_custom_call.1} parent=1 // pred_check
      _
    $region55: #{tpu_custom_call.1} parent=1 // pred_check_branch
      %1825 = sbr.rel (0) target = $region57
    $region56: #{tpu_custom_call.1} parent=1 // pred_region
      %s1827 = ssub.s32 256, 256
      %1828 = vsyncadd [#allocation3], %s1827
      %s1829 = sshll.u32 [#allocation2], 4
      %s1830 = int_to_ptr.vmem [resolvable:$true] %s1829
      %1835 = dma.vmem_to_hbm [thread:$0]  %s1830, 256, %s13, [#allocation3], 128, 128, 8
    $region57: #{tpu_custom_call.1} parent=1 // pred_fallthru
      _
    // Predicated region
    $region58: #{tpu_custom_call.1} parent=1 // pred_check
      _
    $region59: #{tpu_custom_call.1} parent=1 // pred_check_branch
      %1837 = sbr.rel (0) target = $region61
    $region60: #{tpu_custom_call.1} parent=1 // pred_region
      %1838 = dma.done [#allocation3], 256
    $region61: #{tpu_custom_call.1} parent=1 // pred_fallthru
      _
    %1839 = vsyncpa [#allocation3], 1

</llo_original>
